<compile_context>
chip_gen: v7x
topology: tpu7x:2x2x1
jax: 0.10.0
libtpu: 0.0.40
codegen_flags: <defaults>
</compile_context>

<pallas_src>
import functools

import numpy as np
import jax
import jax.numpy as jnp
from jax.experimental import pallas as pl
from jax.experimental.pallas import tpu as pltpu

SIZES = [2000, 1000, 500, 250, 125, 67]
LEAKY_SLOPE = 0.1
BN_EPS = 1e-5
LANE = 128
CIN_PAD = 8            # raw coordinate channels padded to a full sublane group
MAX_PACK_LANES = 512   # lane budget per grid step when packing small levels


def _round_up(n, m):
    return ((n + m - 1) // m) * m


def _leaky(x):
    return jnp.where(x > 0, x, LEAKY_SLOPE * x)


# -----------------------------------------------------------------------------
# In-kernel helpers
# -----------------------------------------------------------------------------
def _conv_same(a, mask, wf, bc, K, pad):
    """'same' 1-D conv as ONE im2col matmul over the packed lane axis.

    a:    (Cin, LA) packed activation; LA = G*LP, a multiple of 128, with LP >= L + pad.
    mask: (1, LA) 0/1 mask zeroing lanes >= L inside every per-sample chunk, so the rolled
          views see exact zero padding (PyTorch Conv1d) and packed samples never leak
          into each other (including the lane wrap-around).
    wf:   (Cout, K*Cin) weights, columns grouped by tap j (lane offset j - pad).
    bc:   (Cout, 1) bias.
    Returns (Cout, LA); invalid lanes hold junk and are re-masked downstream / cropped.
    """
    LA = a.shape[-1]
    a = a * mask
    views = []
    for j in range(K):
        off = j - pad                            # view_j[:, l] == a[:, l + off]
        views.append(a if off == 0 else pltpu.roll(a, (-off) % LA, axis=1))
    xcol = jnp.concatenate(views, axis=0)        # (K*Cin, LA), 8-aligned sublane stacks
    return jnp.dot(wf, xcol, preferred_element_type=jnp.float32) + bc


def _conv_block(a, mask, w1f, b1c, w2f, b2c, t_row, K, pad, pre_act):
    """conv('same') -> [BN folded into w1f/b1c] -> LeakyReLU -> (+time) -> conv('same').

    Dropout is eval-identity.  `pre_act` applies the LeakyReLU that ScI_MR_Res.forward
    inserts between blocks (folded here so nothing leaves VMEM).  `t_row` is the per-block
    time embedding already broadcast over each sample's lane chunk.
    """
    if pre_act:
        a = _leaky(a)
    h = _leaky(_conv_same(a, mask, w1f, b1c, K, pad)) + t_row
    return _conv_same(h, mask, w2f, b2c, K, pad)


# -----------------------------------------------------------------------------
# Fused forward kernel: one packed block of G batch samples per grid step
# -----------------------------------------------------------------------------
def _fused_kernel(
    temb_ref, x_ref, c_ref,
    mask_l_ref, mask_c_ref, exp_l_ref, exp_c_ref, gb_ref,
    cp_w1_ref, cp_b1_ref, cp_w2_ref, cp_b2_ref,
    lp_w1_ref, lp_b1_ref, lp_w2_ref, lp_b2_ref,
    k1_w1_ref, k1_b1_ref, k1_w2_ref, k1_b2_ref,
    k2_w1_ref, k2_b1_ref, k2_w2_ref, k2_b2_ref,
    o_ref, *, K, pad, mid, band_start):
    f32 = jnp.float32

    temb = temb_ref[0]                           # (5*mid, 8) per-sample time columns
    mask_l, mask_c = mask_l_ref[...], mask_c_ref[...]
    exp_l, exp_c = exp_l_ref[...], exp_c_ref[...]

    # Per-block time vectors broadcast over each sample's lane chunk (tiny MXU matmuls
    # against the 0/1 expansion matrices; replaces the old 128-wide replicated MLP).
    def t_lanes(lo, hi, exp):
        return jnp.dot(temb[lo:hi], exp, preferred_element_type=f32)

    t_cond = t_lanes(0, mid, exp_c)
    t_level = t_lanes(mid, 2 * mid, exp_l)
    t_blk1 = t_lanes(2 * mid, 4 * mid, exp_l)
    t_blk2 = t_lanes(4 * mid, 5 * mid, exp_l)

    # ---- condition_preprocess: ConvBlockRes (no BN) at the condition length ----
    d = _conv_block(c_ref[0], mask_c, cp_w1_ref[...], cp_b1_ref[...],
                    cp_w2_ref[...], cp_b2_ref[...], t_cond, K, pad, pre_act=False)

    # ---- F.interpolate(mode='nearest', size=L): block-banded one-hot gather.
    # One (mid, 128) x (128, 128) matmul per 128-lane output tile; band starts are static.
    tiles = [jnp.dot(d[:, s:s + LANE], gb_ref[i], preferred_element_type=f32)
             for i, s in enumerate(band_start)]
    d_up = tiles[0] if len(tiles) == 1 else jnp.concatenate(tiles, axis=1)   # (mid, G*LP)

    # ---- level_preprocess: ConvBlock (BN folded) at the target length ----
    hh = _conv_block(x_ref[0], mask_l, lp_w1_ref[...], lp_b1_ref[...],
                     lp_w2_ref[...], lp_b2_ref[...], t_level, K, pad, pre_act=False)

    # LeakyReLU(h)/LeakyReLU(d) + channel concat folded into block1's pre-activation.
    hcat = jnp.concatenate([hh, d_up], axis=0)                               # (2*mid, G*LP)
    h1 = _conv_block(hcat, mask_l, k1_w1_ref[...], k1_b1_ref[...],
                     k1_w2_ref[...], k1_b2_ref[...], t_blk1, K, pad, pre_act=True)
    out = _conv_block(h1, mask_l, k2_w1_ref[...], k2_b1_ref[...],
                      k2_w2_ref[...], k2_b2_ref[...], t_blk2, K, pad, pre_act=True)

    o_ref[0] = out.astype(o_ref.dtype)           # lane-dense (Cout, G*LP) store


def _const_spec(a):
    nd = a.ndim
    # Constant block index: the pipeline keeps one resident copy across grid steps.
    return pl.BlockSpec(a.shape, lambda b, _nd=nd: (0,) * _nd)


# -----------------------------------------------------------------------------
# Parameter init (PyTorch-like layouts) and host-side preparation (folding / packing)
# -----------------------------------------------------------------------------
def init_params(key, *, num_coords, mid, K, embed_dim, proj_dim, num_steps):
    ks = iter(jax.random.split(key, 64))

    def nrm(shape, scale):
        return jax.random.normal(next(ks), shape, jnp.float32) * scale

    # DiffWave-style sinusoidal embedding table (buffer)
    steps = jnp.arange(num_steps, dtype=jnp.float32)[:, None]
    dims = jnp.arange(embed_dim // 2, dtype=jnp.float32)[None, :]
    table = steps * 10.0 ** (dims * 4.0 / (embed_dim // 2 - 1.0))
    emb_table = jnp.concatenate([jnp.sin(table), jnp.cos(table)], axis=-1)

    def linear(din, dout):                       # nn.Linear layout: weight (dout, din)
        return nrm((dout, din), 1.0 / np.sqrt(din)), nrm((dout,), 0.02)

    def conv(cin, cout):                         # nn.Conv1d layout: weight (cout, cin, K)
        return nrm((cout, cin, K), np.sqrt(2.0 / (cin * K))), nrm((cout,), 0.02)

    def bn(c):                                   # fresh BatchNorm1d eval stats
        return (jnp.ones((c,), jnp.float32), jnp.zeros((c,), jnp.float32),
                jnp.zeros((c,), jnp.float32), jnp.ones((c,), jnp.float32))

    def conv_block(cin, cmid, cout, with_bn):
        w1, b1 = conv(cin, cmid)
        w2, b2 = conv(cmid, cout)
        tw, tb = linear(proj_dim, cmid)
        blk = dict(w1=w1, b1=b1, w2=w2, b2=b2, tw=tw, tb=tb)
        if with_bn:
            blk["bn"] = bn(cmid)
        return blk

    p1w, p1b = linear(embed_dim, proj_dim)
    p2w, p2b = linear(proj_dim, proj_dim)

    return dict(
        num_coords=num_coords, mid_channels=mid, kernel_size=K,
        emb_table=emb_table,
        proj1_w=p1w, proj1_b=p1b, proj2_w=p2w, proj2_b=p2b,
        cp=conv_block(num_coords, mid, mid, with_bn=False),      # condition_preprocess (no BN)
        lp=conv_block(num_coords, mid, mid, with_bn=True),       # level_preprocess
        k1=conv_block(2 * mid, 2 * mid, mid, with_bn=True),      # conditioned_network_block1
        k2=conv_block(mid, mid, num_coords, with_bn=True),       # conditioned_network_block2
    )


def prepare_params(raw):
    """One-time host prep: im2col weight flattening (with cin padded to 8 for the two
    raw-input convs), BatchNorm(eval) folding, time-linear stacking, column biases."""
    mid, K = raw["mid_channels"], raw["kernel_size"]
    pad = (K - 1) // 2
    # NOTE: ConvBlockRes uses padding=1 literally; identical to 'same' for kernel_size=3.

    def col(b):
        return jnp.asarray(b, jnp.float32).reshape(-1, 1)

    def flat_w(w, cin_pad=None):                 # (Cout,Cin,K) -> (Cout, K*Cin), tap-major cols
        co, ci, k = w.shape
        if cin_pad is not None and cin_pad > ci:
            w = jnp.pad(w, ((0, 0), (0, cin_pad - ci), (0, 0)))
        return jnp.transpose(w, (0, 2, 1)).reshape(co, -1)

    def fold_bn(wf, b, bnp):                     # fold BatchNorm1d(eval) into preceding conv
        gamma, beta, mu, var = bnp
        s = gamma / jnp.sqrt(var + BN_EPS)
        return wf * s[:, None], col((b - mu) * s + beta)

    convs = [flat_w(raw["cp"]["w1"], CIN_PAD), col(raw["cp"]["b1"]),
             flat_w(raw["cp"]["w2"]), col(raw["cp"]["b2"])]
    lp_w1f, lp_b1c = fold_bn(flat_w(raw["lp"]["w1"], CIN_PAD), raw["lp"]["b1"], raw["lp"]["bn"])
    convs += [lp_w1f, lp_b1c, flat_w(raw["lp"]["w2"]), col(raw["lp"]["b2"])]
    for name in ("k1", "k2"):
        blk = raw[name]
        w1f, b1c = fold_bn(flat_w(blk["w1"]), blk["b1"], blk["bn"])
        convs += [w1f, b1c, flat_w(blk["w2"]), col(blk["b2"])]

    # per-block time linears stacked: [cond(mid) | level(mid) | block1(2*mid) | block2(mid)]
    tw = jnp.concatenate([raw["cp"]["tw"], raw["lp"]["tw"],
                          raw["k1"]["tw"], raw["k2"]["tw"]], axis=0)
    tb = jnp.concatenate([raw["cp"]["tb"], raw["lp"]["tb"],
                          raw["k1"]["tb"], raw["k2"]["tb"]], axis=0)

    return dict(cin=raw["num_coords"], mid=mid, K=K, pad=pad,
                emb_table=raw["emb_table"],
                p1w=raw["proj1_w"], p1b=raw["proj1_b"],
                p2w=raw["proj2_w"], p2b=raw["proj2_b"],
                tw=tw, tb=tb, convs=tuple(convs))


def _choose_pack(N, LP):
    """Samples packed per grid step (lane axis).  Keeps >= 2 grid steps when N >= 2 so
    both v7x TensorCores get work; packing amortizes serial-grid overhead on v5e/v6e."""
    G = max(1, min(N, MAX_PACK_LANES // LP, 8))
    if N >= 2:
        G = min(G, (N + 1) // 2)
    return G


def _pack_constants(L, Lc, LP, LcP, G):
    """Host-built lane constants for a packed block of G samples (pure numpy, static)."""
    exp_l = np.zeros((8, G * LP), np.float32)    # row g == 1 on sample g's valid lanes
    exp_c = np.zeros((8, G * LcP), np.float32)
    for g in range(G):
        exp_l[g, g * LP:g * LP + L] = 1.0
        exp_c[g, g * LcP:g * LcP + Lc] = 1.0
    mask_l = exp_l.sum(axis=0, keepdims=True)
    mask_c = exp_c.sum(axis=0, keepdims=True)

    # Block-banded nearest-neighbour upsample: for every 128-lane output tile, a
    # (128, 128) one-hot band over the contiguous source lanes it gathers from.
    n_tiles = (G * LP) // LANE
    gb = np.zeros((n_tiles, LANE, LANE), np.float32)
    band_start = []
    for ti in range(n_tiles):
        out0 = ti * LANE
        g = out0 // LP                           # LP is a multiple of 128 -> tile in one sample
        loc0 = out0 - g * LP
        src = [(p * Lc) // L for p in range(loc0, min(loc0 + LANE, L))]
        start_local = min(src[0] if src else 0, LcP - LANE)
        start = g * LcP + start_local
        band_start.append(int(start))
        for jl in range(LANE):
            p = loc0 + jl
            if p >= L:
                continue
            r = (p * Lc) // L - start_local
            assert 0 <= r < LANE                 # band always covers the tile (Lc <= L)
            gb[ti, r, jl] = 1.0
    return (jnp.asarray(mask_l), jnp.asarray(mask_c), jnp.asarray(exp_l),
            jnp.asarray(exp_c), jnp.asarray(gb), tuple(band_start))


# -----------------------------------------------------------------------------
# ScI_MR_Res forward: one fused pallas_call
# -----------------------------------------------------------------------------
def sci_mr_res_forward(prep, x, t, c):
    N, cin, L = x.shape
    Lc = c.shape[-1]
    assert cin == prep["cin"] and cin <= CIN_PAD
    assert Lc <= L, "condition is expected at a coarser (or equal) resolution"
    mid, K, pad = prep["mid"], prep["K"], prep["pad"]

    LP = _round_up(L + pad, LANE)
    LcP = _round_up(Lc + pad, LANE)
    G = _choose_pack(N, LP)
    NB = -(-N // G)
    Npad = NB * G

    # ---- diffusion-embedding MLP + per-block time linears, hoisted out of the kernel
    # (tiny (N, proj_dim) math; in-kernel it replicated 128 identical columns of MXU work).
    emb = prep["emb_table"][t]                                    # (N, E) integer-step gather
    h = jax.nn.silu(emb @ prep["p1w"].T + prep["p1b"])
    h = jax.nn.silu(h @ prep["p2w"].T + prep["p2b"])
    temb = h @ prep["tw"].T + prep["tb"]                          # (N, 5*mid)

    # lane-dense packed inputs: G samples side-by-side per grid block, channels padded to 8
    def pack(a, Lpad):
        n, ci, l = a.shape
        a = jnp.pad(a, ((0, Npad - n), (0, CIN_PAD - ci), (0, Lpad - l)))
        return (a.reshape(NB, G, CIN_PAD, Lpad)
                 .transpose(0, 2, 1, 3)
                 .reshape(NB, CIN_PAD, G * Lpad))

    xp = pack(x, LP)
    cpk = pack(c, LcP)
    temb_pk = jnp.pad(temb, ((0, Npad - N), (0, 0))).reshape(NB, G, 5 * mid)
    temb_pk = jnp.pad(temb_pk.transpose(0, 2, 1), ((0, 0), (0, 0), (0, 8 - G)))  # (NB,5*mid,8)

    mask_l, mask_c, exp_l, exp_c, gb, band_start = _pack_constants(L, Lc, LP, LcP, G)
    consts = [mask_l, mask_c, exp_l, exp_c, gb] + list(prep["convs"])
    inputs = [temb_pk, xp, cpk] + consts

    in_specs = (
        [pl.BlockSpec((1, 5 * mid, 8), lambda b: (b, 0, 0)),
         pl.BlockSpec((1, CIN_PAD, G * LP), lambda b: (b, 0, 0)),
         pl.BlockSpec((1, CIN_PAD, G * LcP), lambda b: (b, 0, 0))]
        + [_const_spec(a) for a in consts]
    )

    kern = functools.partial(_fused_kernel, K=K, pad=pad, mid=mid, band_start=band_start)
    out = pl.pallas_call(
        kern,
        out_shape=jax.ShapeDtypeStruct((NB, cin, G * LP), jnp.float32),
        grid_spec=pltpu.PrefetchScalarGridSpec(
            num_scalar_prefetch=0,
            grid=(NB,),
            in_specs=in_specs,
            out_specs=pl.BlockSpec((1, cin, G * LP), lambda b: (b, 0, 0)),
        ),
        compiler_params=pltpu.CompilerParams(dimension_semantics=("parallel",)),
    )(*inputs)

    # unpack lanes back to (N, cin, L)
    out = (out.reshape(NB, cin, G, LP)
              .transpose(0, 2, 1, 3)
              .reshape(Npad, cin, LP))
    return out[:N, :, :L]


if __name__ == "__main__":
    level = 5
    N, num_coords, mid, K = 4, 3, 8, 3                # batch / num_coords / model_channels / K
    embed_dim, proj_dim, num_steps = 32, 128, 50
    L = SIZES[level]                                  # 67 (target length at this level)
    Lc = 34                                           # coarser-scale condition length

    key = jax.random.PRNGKey(0)
    kp, kx, kc, kt = jax.random.split(key, 4)
    raw = init_params(kp, num_coords=num_coords, mid=mid, K=K,
                      embed_dim=embed_dim, proj_dim=proj_dim, num_steps=num_steps)
    prep = prepare_params(raw)

    x = jax.random.normal(kx, (N, num_coords, L), jnp.float32)
    c = jax.random.normal(kc, (N, num_coords, Lc), jnp.float32)
    t = jax.random.randint(kt, (N,), 0, num_steps, dtype=jnp.int32)

    fwd = jax.jit(functools.partial(sci_mr_res_forward, prep))
    out = jax.block_until_ready(fwd(x, t, c))
    assert out.shape == (N, num_coords, L) and out.dtype == jnp.float32
    assert bool(jnp.all(jnp.isfinite(out)))
    print("KERNEL_OK")
</pallas_src>

<mosaic_0001>
module attributes {stable_mosaic.version = 11 : i64} {
  func.func @_fused_kernel(%arg0: i32, %arg1: memref<1x40x8xf32, #tpu.memory_space<vmem>>, %arg2: memref<1x8x256xf32, #tpu.memory_space<vmem>>, %arg3: memref<1x8x256xf32, #tpu.memory_space<vmem>>, %arg4: memref<1x256xf32, #tpu.memory_space<vmem>>, %arg5: memref<1x256xf32, #tpu.memory_space<vmem>>, %arg6: memref<8x256xf32, #tpu.memory_space<vmem>>, %arg7: memref<8x256xf32, #tpu.memory_space<vmem>>, %arg8: memref<2x128x128xf32, #tpu.memory_space<vmem>>, %arg9: memref<8x24xf32, #tpu.memory_space<vmem>>, %arg10: memref<8x1xf32, #tpu.memory_space<vmem>>, %arg11: memref<8x24xf32, #tpu.memory_space<vmem>>, %arg12: memref<8x1xf32, #tpu.memory_space<vmem>>, %arg13: memref<8x24xf32, #tpu.memory_space<vmem>>, %arg14: memref<8x1xf32, #tpu.memory_space<vmem>>, %arg15: memref<8x24xf32, #tpu.memory_space<vmem>>, %arg16: memref<8x1xf32, #tpu.memory_space<vmem>>, %arg17: memref<16x48xf32, #tpu.memory_space<vmem>>, %arg18: memref<16x1xf32, #tpu.memory_space<vmem>>, %arg19: memref<8x48xf32, #tpu.memory_space<vmem>>, %arg20: memref<8x1xf32, #tpu.memory_space<vmem>>, %arg21: memref<8x24xf32, #tpu.memory_space<vmem>>, %arg22: memref<8x1xf32, #tpu.memory_space<vmem>>, %arg23: memref<3x24xf32, #tpu.memory_space<vmem>>, %arg24: memref<3x1xf32, #tpu.memory_space<vmem>>, %arg25: memref<1x3x256xf32, #tpu.memory_space<vmem>>) attributes {dimension_semantics = [#tpu.dimension_semantics<parallel>], iteration_bounds = array<i64: 2>, scalar_prefetch = 0 : i64, scratch_operands = 0 : i64, tpu.core_type = #tpu.core_type<tc>, window_params = [{transform_indices = @transform_0, window_bounds = array<i64: 1, 40, 8>}, {transform_indices = @transform_1, window_bounds = array<i64: 1, 8, 256>}, {transform_indices = @transform_2, window_bounds = array<i64: 1, 8, 256>}, {pipeline_mode = #tpu.pipeline_mode<synchronous>, transform_indices = @transform_3, window_bounds = array<i64: 1, 256>}, {pipeline_mode = #tpu.pipeline_mode<synchronous>, transform_indices = @transform_4, window_bounds = array<i64: 1, 256>}, {pipeline_mode = #tpu.pipeline_mode<synchronous>, transform_indices = @transform_5, window_bounds = array<i64: 8, 256>}, {pipeline_mode = #tpu.pipeline_mode<synchronous>, transform_indices = @transform_6, window_bounds = array<i64: 8, 256>}, {pipeline_mode = #tpu.pipeline_mode<synchronous>, transform_indices = @transform_7, window_bounds = array<i64: 2, 128, 128>}, {pipeline_mode = #tpu.pipeline_mode<synchronous>, transform_indices = @transform_8, window_bounds = array<i64: 8, 24>}, {pipeline_mode = #tpu.pipeline_mode<synchronous>, transform_indices = @transform_9, window_bounds = array<i64: 8, 1>}, {pipeline_mode = #tpu.pipeline_mode<synchronous>, transform_indices = @transform_10, window_bounds = array<i64: 8, 24>}, {pipeline_mode = #tpu.pipeline_mode<synchronous>, transform_indices = @transform_11, window_bounds = array<i64: 8, 1>}, {pipeline_mode = #tpu.pipeline_mode<synchronous>, transform_indices = @transform_12, window_bounds = array<i64: 8, 24>}, {pipeline_mode = #tpu.pipeline_mode<synchronous>, transform_indices = @transform_13, window_bounds = array<i64: 8, 1>}, {pipeline_mode = #tpu.pipeline_mode<synchronous>, transform_indices = @transform_14, window_bounds = array<i64: 8, 24>}, {pipeline_mode = #tpu.pipeline_mode<synchronous>, transform_indices = @transform_15, window_bounds = array<i64: 8, 1>}, {pipeline_mode = #tpu.pipeline_mode<synchronous>, transform_indices = @transform_16, window_bounds = array<i64: 16, 48>}, {pipeline_mode = #tpu.pipeline_mode<synchronous>, transform_indices = @transform_17, window_bounds = array<i64: 16, 1>}, {pipeline_mode = #tpu.pipeline_mode<synchronous>, transform_indices = @transform_18, window_bounds = array<i64: 8, 48>}, {pipeline_mode = #tpu.pipeline_mode<synchronous>, transform_indices = @transform_19, window_bounds = array<i64: 8, 1>}, {pipeline_mode = #tpu.pipeline_mode<synchronous>, transform_indices = @transform_20, window_bounds = array<i64: 8, 24>}, {pipeline_mode = #tpu.pipeline_mode<synchronous>, transform_indices = @transform_21, window_bounds = array<i64: 8, 1>}, {pipeline_mode = #tpu.pipeline_mode<synchronous>, transform_indices = @transform_22, window_bounds = array<i64: 3, 24>}, {pipeline_mode = #tpu.pipeline_mode<synchronous>, transform_indices = @transform_23, window_bounds = array<i64: 3, 1>}, {transform_indices = @transform_24, window_bounds = array<i64: 1, 3, 256>}]} {
    %c0 = arith.constant 0 : index
    %c0_0 = arith.constant 0 : index
    %c0_1 = arith.constant 0 : index
    %0 = vector.load %arg1[%c0, %c0_0, %c0_1] : memref<1x40x8xf32, #tpu.memory_space<vmem>>, vector<1x40x8xf32>
    %1 = vector.shape_cast %0 : vector<1x40x8xf32> to vector<40x8xf32>
    %c0_2 = arith.constant 0 : index
    %c0_3 = arith.constant 0 : index
    %2 = vector.load %arg4[%c0_2, %c0_3] : memref<1x256xf32, #tpu.memory_space<vmem>>, vector<1x256xf32>
    %c0_4 = arith.constant 0 : index
    %c0_5 = arith.constant 0 : index
    %3 = vector.load %arg5[%c0_4, %c0_5] : memref<1x256xf32, #tpu.memory_space<vmem>>, vector<1x256xf32>
    %c0_6 = arith.constant 0 : index
    %c0_7 = arith.constant 0 : index
    %4 = vector.load %arg6[%c0_6, %c0_7] : memref<8x256xf32, #tpu.memory_space<vmem>>, vector<8x256xf32>
    %c0_8 = arith.constant 0 : index
    %c0_9 = arith.constant 0 : index
    %5 = vector.load %arg7[%c0_8, %c0_9] : memref<8x256xf32, #tpu.memory_space<vmem>>, vector<8x256xf32>
    %6 = vector.extract_strided_slice %1 {offsets = [0, 0], sizes = [8, 8], strides = [1, 1]} : vector<40x8xf32> to vector<8x8xf32>
    %cst = arith.constant dense<0.000000e+00> : vector<8x256xf32>
    %7 = tpu.matmul %6, %5, %cst {dimension_numbers = #tpu.dot_dimension_numbers<[1], [0], [0], [1], [0, 0, 1, 1], [], []>} : vector<8x8xf32>, vector<8x256xf32>, vector<8x256xf32> -> vector<8x256xf32>
    %8 = vector.extract_strided_slice %1 {offsets = [8, 0], sizes = [8, 8], strides = [1, 1]} : vector<40x8xf32> to vector<8x8xf32>
    %cst_10 = arith.constant dense<0.000000e+00> : vector<8x256xf32>
    %9 = tpu.matmul %8, %4, %cst_10 {dimension_numbers = #tpu.dot_dimension_numbers<[1], [0], [0], [1], [0, 0, 1, 1], [], []>} : vector<8x8xf32>, vector<8x256xf32>, vector<8x256xf32> -> vector<8x256xf32>
    %10 = vector.extract_strided_slice %1 {offsets = [16, 0], sizes = [16, 8], strides = [1, 1]} : vector<40x8xf32> to vector<16x8xf32>
    %cst_11 = arith.constant dense<0.000000e+00> : vector<16x256xf32>
    %11 = tpu.matmul %10, %4, %cst_11 {dimension_numbers = #tpu.dot_dimension_numbers<[1], [0], [0], [1], [0, 0, 1, 1], [], []>} : vector<16x8xf32>, vector<8x256xf32>, vector<16x256xf32> -> vector<16x256xf32>
    %12 = vector.extract_strided_slice %1 {offsets = [32, 0], sizes = [8, 8], strides = [1, 1]} : vector<40x8xf32> to vector<8x8xf32>
    %cst_12 = arith.constant dense<0.000000e+00> : vector<8x256xf32>
    %13 = tpu.matmul %12, %4, %cst_12 {dimension_numbers = #tpu.dot_dimension_numbers<[1], [0], [0], [1], [0, 0, 1, 1], [], []>} : vector<8x8xf32>, vector<8x256xf32>, vector<8x256xf32> -> vector<8x256xf32>
    %c0_13 = arith.constant 0 : index
    %c0_14 = arith.constant 0 : index
    %c0_15 = arith.constant 0 : index
    %14 = vector.load %arg3[%c0_13, %c0_14, %c0_15] : memref<1x8x256xf32, #tpu.memory_space<vmem>>, vector<1x8x256xf32>
    %15 = vector.shape_cast %14 : vector<1x8x256xf32> to vector<8x256xf32>
    %c0_16 = arith.constant 0 : index
    %c0_17 = arith.constant 0 : index
    %16 = vector.load %arg9[%c0_16, %c0_17] : memref<8x24xf32, #tpu.memory_space<vmem>>, vector<8x24xf32>
    %c0_18 = arith.constant 0 : index
    %c0_19 = arith.constant 0 : index
    %17 = vector.load %arg10[%c0_18, %c0_19] : memref<8x1xf32, #tpu.memory_space<vmem>>, vector<8x1xf32>
    %c0_20 = arith.constant 0 : index
    %c0_21 = arith.constant 0 : index
    %18 = vector.load %arg11[%c0_20, %c0_21] : memref<8x24xf32, #tpu.memory_space<vmem>>, vector<8x24xf32>
    %c0_22 = arith.constant 0 : index
    %c0_23 = arith.constant 0 : index
    %19 = vector.load %arg12[%c0_22, %c0_23] : memref<8x1xf32, #tpu.memory_space<vmem>>, vector<8x1xf32>
    %20 = vector.broadcast %3 : vector<1x256xf32> to vector<8x256xf32>
    %21 = arith.mulf %15, %20 : vector<8x256xf32>
    %c1_i32 = arith.constant 1 : i32
    %22 = tpu.dynamic_rotate %21 by %c1_i32 dim 1 : vector<8x256xf32>, i32 -> vector<8x256xf32>
    %c255_i32 = arith.constant 255 : i32
    %23 = tpu.dynamic_rotate %21 by %c255_i32 dim 1 : vector<8x256xf32>, i32 -> vector<8x256xf32>
    %24 = tpu.concatenate %22, %21, %23 in 0 : vector<8x256xf32>, vector<8x256xf32>, vector<8x256xf32> -> vector<24x256xf32>
    %cst_24 = arith.constant dense<0.000000e+00> : vector<8x256xf32>
    %25 = tpu.matmul %16, %24, %cst_24 {dimension_numbers = #tpu.dot_dimension_numbers<[1], [0], [0], [1], [0, 0, 1, 1], [], []>} : vector<8x24xf32>, vector<24x256xf32>, vector<8x256xf32> -> vector<8x256xf32>
    %26 = vector.broadcast %17 : vector<8x1xf32> to vector<8x256xf32>
    %27 = arith.addf %25, %26 : vector<8x256xf32>
    %cst_25 = arith.constant 0.000000e+00 : f32
    %28 = vector.broadcast %cst_25 : f32 to vector<8x256xf32>
    %29 = arith.cmpf ogt, %27, %28 : vector<8x256xf32>
    %cst_26 = arith.constant 1.000000e-01 : f32
    %30 = vector.broadcast %cst_26 : f32 to vector<8x256xf32>
    %31 = arith.mulf %30, %27 : vector<8x256xf32>
    %32 = arith.select %29, %27, %31 : vector<8x256xi1>, vector<8x256xf32>
    %33 = arith.addf %32, %7 : vector<8x256xf32>
    %34 = vector.broadcast %3 : vector<1x256xf32> to vector<8x256xf32>
    %35 = arith.mulf %33, %34 : vector<8x256xf32>
    %c1_i32_27 = arith.constant 1 : i32
    %36 = tpu.dynamic_rotate %35 by %c1_i32_27 dim 1 : vector<8x256xf32>, i32 -> vector<8x256xf32>
    %c255_i32_28 = arith.constant 255 : i32
    %37 = tpu.dynamic_rotate %35 by %c255_i32_28 dim 1 : vector<8x256xf32>, i32 -> vector<8x256xf32>
    %38 = tpu.concatenate %36, %35, %37 in 0 : vector<8x256xf32>, vector<8x256xf32>, vector<8x256xf32> -> vector<24x256xf32>
    %cst_29 = arith.constant dense<0.000000e+00> : vector<8x256xf32>
    %39 = tpu.matmul %18, %38, %cst_29 {dimension_numbers = #tpu.dot_dimension_numbers<[1], [0], [0], [1], [0, 0, 1, 1], [], []>} : vector<8x24xf32>, vector<24x256xf32>, vector<8x256xf32> -> vector<8x256xf32>
    %40 = vector.broadcast %19 : vector<8x1xf32> to vector<8x256xf32>
    %41 = arith.addf %39, %40 : vector<8x256xf32>
    %42 = vector.extract_strided_slice %41 {offsets = [0, 0], sizes = [8, 128], strides = [1, 1]} : vector<8x256xf32> to vector<8x128xf32>
    %c0_30 = arith.constant 0 : index
    %c0_31 = arith.constant 0 : index
    %c0_32 = arith.constant 0 : index
    %43 = vector.load %arg8[%c0_30, %c0_31, %c0_32] : memref<2x128x128xf32, #tpu.memory_space<vmem>>, vector<1x128x128xf32>
    %44 = vector.shape_cast %43 : vector<1x128x128xf32> to vector<128x128xf32>
    %cst_33 = arith.constant dense<0.000000e+00> : vector<8x128xf32>
    %45 = tpu.matmul %42, %44, %cst_33 {dimension_numbers = #tpu.dot_dimension_numbers<[1], [0], [0], [1], [0, 0, 1, 1], [], []>} : vector<8x128xf32>, vector<128x128xf32>, vector<8x128xf32> -> vector<8x128xf32>
    %46 = vector.extract_strided_slice %41 {offsets = [0, 128], sizes = [8, 128], strides = [1, 1]} : vector<8x256xf32> to vector<8x128xf32>
    %c1 = arith.constant 1 : index
    %c0_34 = arith.constant 0 : index
    %c0_35 = arith.constant 0 : index
    %47 = vector.load %arg8[%c1, %c0_34, %c0_35] : memref<2x128x128xf32, #tpu.memory_space<vmem>>, vector<1x128x128xf32>
    %48 = vector.shape_cast %47 : vector<1x128x128xf32> to vector<128x128xf32>
    %cst_36 = arith.constant dense<0.000000e+00> : vector<8x128xf32>
    %49 = tpu.matmul %46, %48, %cst_36 {dimension_numbers = #tpu.dot_dimension_numbers<[1], [0], [0], [1], [0, 0, 1, 1], [], []>} : vector<8x128xf32>, vector<128x128xf32>, vector<8x128xf32> -> vector<8x128xf32>
    %50 = tpu.concatenate %45, %49 in 1 : vector<8x128xf32>, vector<8x128xf32> -> vector<8x256xf32>
    %c0_37 = arith.constant 0 : index
    %c0_38 = arith.constant 0 : index
    %c0_39 = arith.constant 0 : index
    %51 = vector.load %arg2[%c0_37, %c0_38, %c0_39] : memref<1x8x256xf32, #tpu.memory_space<vmem>>, vector<1x8x256xf32>
    %52 = vector.shape_cast %51 : vector<1x8x256xf32> to vector<8x256xf32>
    %c0_40 = arith.constant 0 : index
    %c0_41 = arith.constant 0 : index
    %53 = vector.load %arg13[%c0_40, %c0_41] : memref<8x24xf32, #tpu.memory_space<vmem>>, vector<8x24xf32>
    %c0_42 = arith.constant 0 : index
    %c0_43 = arith.constant 0 : index
    %54 = vector.load %arg14[%c0_42, %c0_43] : memref<8x1xf32, #tpu.memory_space<vmem>>, vector<8x1xf32>
    %c0_44 = arith.constant 0 : index
    %c0_45 = arith.constant 0 : index
    %55 = vector.load %arg15[%c0_44, %c0_45] : memref<8x24xf32, #tpu.memory_space<vmem>>, vector<8x24xf32>
    %c0_46 = arith.constant 0 : index
    %c0_47 = arith.constant 0 : index
    %56 = vector.load %arg16[%c0_46, %c0_47] : memref<8x1xf32, #tpu.memory_space<vmem>>, vector<8x1xf32>
    %57 = vector.broadcast %2 : vector<1x256xf32> to vector<8x256xf32>
    %58 = arith.mulf %52, %57 : vector<8x256xf32>
    %c1_i32_48 = arith.constant 1 : i32
    %59 = tpu.dynamic_rotate %58 by %c1_i32_48 dim 1 : vector<8x256xf32>, i32 -> vector<8x256xf32>
    %c255_i32_49 = arith.constant 255 : i32
    %60 = tpu.dynamic_rotate %58 by %c255_i32_49 dim 1 : vector<8x256xf32>, i32 -> vector<8x256xf32>
    %61 = tpu.concatenate %59, %58, %60 in 0 : vector<8x256xf32>, vector<8x256xf32>, vector<8x256xf32> -> vector<24x256xf32>
    %cst_50 = arith.constant dense<0.000000e+00> : vector<8x256xf32>
    %62 = tpu.matmul %53, %61, %cst_50 {dimension_numbers = #tpu.dot_dimension_numbers<[1], [0], [0], [1], [0, 0, 1, 1], [], []>} : vector<8x24xf32>, vector<24x256xf32>, vector<8x256xf32> -> vector<8x256xf32>
    %63 = vector.broadcast %54 : vector<8x1xf32> to vector<8x256xf32>
    %64 = arith.addf %62, %63 : vector<8x256xf32>
    %cst_51 = arith.constant 0.000000e+00 : f32
    %65 = vector.broadcast %cst_51 : f32 to vector<8x256xf32>
    %66 = arith.cmpf ogt, %64, %65 : vector<8x256xf32>
    %cst_52 = arith.constant 1.000000e-01 : f32
    %67 = vector.broadcast %cst_52 : f32 to vector<8x256xf32>
    %68 = arith.mulf %67, %64 : vector<8x256xf32>
    %69 = arith.select %66, %64, %68 : vector<8x256xi1>, vector<8x256xf32>
    %70 = arith.addf %69, %9 : vector<8x256xf32>
    %71 = vector.broadcast %2 : vector<1x256xf32> to vector<8x256xf32>
    %72 = arith.mulf %70, %71 : vector<8x256xf32>
    %c1_i32_53 = arith.constant 1 : i32
    %73 = tpu.dynamic_rotate %72 by %c1_i32_53 dim 1 : vector<8x256xf32>, i32 -> vector<8x256xf32>
    %c255_i32_54 = arith.constant 255 : i32
    %74 = tpu.dynamic_rotate %72 by %c255_i32_54 dim 1 : vector<8x256xf32>, i32 -> vector<8x256xf32>
    %75 = tpu.concatenate %73, %72, %74 in 0 : vector<8x256xf32>, vector<8x256xf32>, vector<8x256xf32> -> vector<24x256xf32>
    %cst_55 = arith.constant dense<0.000000e+00> : vector<8x256xf32>
    %76 = tpu.matmul %55, %75, %cst_55 {dimension_numbers = #tpu.dot_dimension_numbers<[1], [0], [0], [1], [0, 0, 1, 1], [], []>} : vector<8x24xf32>, vector<24x256xf32>, vector<8x256xf32> -> vector<8x256xf32>
    %77 = vector.broadcast %56 : vector<8x1xf32> to vector<8x256xf32>
    %78 = arith.addf %76, %77 : vector<8x256xf32>
    %79 = tpu.concatenate %78, %50 in 0 : vector<8x256xf32>, vector<8x256xf32> -> vector<16x256xf32>
    %c0_56 = arith.constant 0 : index
    %c0_57 = arith.constant 0 : index
    %80 = vector.load %arg17[%c0_56, %c0_57] : memref<16x48xf32, #tpu.memory_space<vmem>>, vector<16x48xf32>
    %c0_58 = arith.constant 0 : index
    %c0_59 = arith.constant 0 : index
    %81 = vector.load %arg18[%c0_58, %c0_59] : memref<16x1xf32, #tpu.memory_space<vmem>>, vector<16x1xf32>
    %c0_60 = arith.constant 0 : index
    %c0_61 = arith.constant 0 : index
    %82 = vector.load %arg19[%c0_60, %c0_61] : memref<8x48xf32, #tpu.memory_space<vmem>>, vector<8x48xf32>
    %c0_62 = arith.constant 0 : index
    %c0_63 = arith.constant 0 : index
    %83 = vector.load %arg20[%c0_62, %c0_63] : memref<8x1xf32, #tpu.memory_space<vmem>>, vector<8x1xf32>
    %cst_64 = arith.constant 0.000000e+00 : f32
    %84 = vector.broadcast %cst_64 : f32 to vector<16x256xf32>
    %85 = arith.cmpf ogt, %79, %84 : vector<16x256xf32>
    %cst_65 = arith.constant 1.000000e-01 : f32
    %86 = vector.broadcast %cst_65 : f32 to vector<16x256xf32>
    %87 = arith.mulf %86, %79 : vector<16x256xf32>
    %88 = arith.select %85, %79, %87 : vector<16x256xi1>, vector<16x256xf32>
    %89 = vector.broadcast %2 : vector<1x256xf32> to vector<16x256xf32>
    %90 = arith.mulf %88, %89 : vector<16x256xf32>
    %c1_i32_66 = arith.constant 1 : i32
    %91 = tpu.dynamic_rotate %90 by %c1_i32_66 dim 1 : vector<16x256xf32>, i32 -> vector<16x256xf32>
    %c255_i32_67 = arith.constant 255 : i32
    %92 = tpu.dynamic_rotate %90 by %c255_i32_67 dim 1 : vector<16x256xf32>, i32 -> vector<16x256xf32>
    %93 = tpu.concatenate %91, %90, %92 in 0 : vector<16x256xf32>, vector<16x256xf32>, vector<16x256xf32> -> vector<48x256xf32>
    %cst_68 = arith.constant dense<0.000000e+00> : vector<16x256xf32>
    %94 = tpu.matmul %80, %93, %cst_68 {dimension_numbers = #tpu.dot_dimension_numbers<[1], [0], [0], [1], [0, 0, 1, 1], [], []>} : vector<16x48xf32>, vector<48x256xf32>, vector<16x256xf32> -> vector<16x256xf32>
    %95 = vector.broadcast %81 : vector<16x1xf32> to vector<16x256xf32>
    %96 = arith.addf %94, %95 : vector<16x256xf32>
    %cst_69 = arith.constant 0.000000e+00 : f32
    %97 = vector.broadcast %cst_69 : f32 to vector<16x256xf32>
    %98 = arith.cmpf ogt, %96, %97 : vector<16x256xf32>
    %cst_70 = arith.constant 1.000000e-01 : f32
    %99 = vector.broadcast %cst_70 : f32 to vector<16x256xf32>
    %100 = arith.mulf %99, %96 : vector<16x256xf32>
    %101 = arith.select %98, %96, %100 : vector<16x256xi1>, vector<16x256xf32>
    %102 = arith.addf %101, %11 : vector<16x256xf32>
    %103 = vector.broadcast %2 : vector<1x256xf32> to vector<16x256xf32>
    %104 = arith.mulf %102, %103 : vector<16x256xf32>
    %c1_i32_71 = arith.constant 1 : i32
    %105 = tpu.dynamic_rotate %104 by %c1_i32_71 dim 1 : vector<16x256xf32>, i32 -> vector<16x256xf32>
    %c255_i32_72 = arith.constant 255 : i32
    %106 = tpu.dynamic_rotate %104 by %c255_i32_72 dim 1 : vector<16x256xf32>, i32 -> vector<16x256xf32>
    %107 = tpu.concatenate %105, %104, %106 in 0 : vector<16x256xf32>, vector<16x256xf32>, vector<16x256xf32> -> vector<48x256xf32>
    %cst_73 = arith.constant dense<0.000000e+00> : vector<8x256xf32>
    %108 = tpu.matmul %82, %107, %cst_73 {dimension_numbers = #tpu.dot_dimension_numbers<[1], [0], [0], [1], [0, 0, 1, 1], [], []>} : vector<8x48xf32>, vector<48x256xf32>, vector<8x256xf32> -> vector<8x256xf32>
    %109 = vector.broadcast %83 : vector<8x1xf32> to vector<8x256xf32>
    %110 = arith.addf %108, %109 : vector<8x256xf32>
    %c0_74 = arith.constant 0 : index
    %c0_75 = arith.constant 0 : index
    %111 = vector.load %arg21[%c0_74, %c0_75] : memref<8x24xf32, #tpu.memory_space<vmem>>, vector<8x24xf32>
    %c0_76 = arith.constant 0 : index
    %c0_77 = arith.constant 0 : index
    %112 = vector.load %arg22[%c0_76, %c0_77] : memref<8x1xf32, #tpu.memory_space<vmem>>, vector<8x1xf32>
    %c0_78 = arith.constant 0 : index
    %c0_79 = arith.constant 0 : index
    %113 = vector.load %arg23[%c0_78, %c0_79] : memref<3x24xf32, #tpu.memory_space<vmem>>, vector<3x24xf32>
    %c0_80 = arith.constant 0 : index
    %c0_81 = arith.constant 0 : index
    %114 = vector.load %arg24[%c0_80, %c0_81] : memref<3x1xf32, #tpu.memory_space<vmem>>, vector<3x1xf32>
    %cst_82 = arith.constant 0.000000e+00 : f32
    %115 = vector.broadcast %cst_82 : f32 to vector<8x256xf32>
    %116 = arith.cmpf ogt, %110, %115 : vector<8x256xf32>
    %cst_83 = arith.constant 1.000000e-01 : f32
    %117 = vector.broadcast %cst_83 : f32 to vector<8x256xf32>
    %118 = arith.mulf %117, %110 : vector<8x256xf32>
    %119 = arith.select %116, %110, %118 : vector<8x256xi1>, vector<8x256xf32>
    %120 = vector.broadcast %2 : vector<1x256xf32> to vector<8x256xf32>
    %121 = arith.mulf %119, %120 : vector<8x256xf32>
    %c1_i32_84 = arith.constant 1 : i32
    %122 = tpu.dynamic_rotate %121 by %c1_i32_84 dim 1 : vector<8x256xf32>, i32 -> vector<8x256xf32>
    %c255_i32_85 = arith.constant 255 : i32
    %123 = tpu.dynamic_rotate %121 by %c255_i32_85 dim 1 : vector<8x256xf32>, i32 -> vector<8x256xf32>
    %124 = tpu.concatenate %122, %121, %123 in 0 : vector<8x256xf32>, vector<8x256xf32>, vector<8x256xf32> -> vector<24x256xf32>
    %cst_86 = arith.constant dense<0.000000e+00> : vector<8x256xf32>
    %125 = tpu.matmul %111, %124, %cst_86 {dimension_numbers = #tpu.dot_dimension_numbers<[1], [0], [0], [1], [0, 0, 1, 1], [], []>} : vector<8x24xf32>, vector<24x256xf32>, vector<8x256xf32> -> vector<8x256xf32>
    %126 = vector.broadcast %112 : vector<8x1xf32> to vector<8x256xf32>
    %127 = arith.addf %125, %126 : vector<8x256xf32>
    %cst_87 = arith.constant 0.000000e+00 : f32
    %128 = vector.broadcast %cst_87 : f32 to vector<8x256xf32>
    %129 = arith.cmpf ogt, %127, %128 : vector<8x256xf32>
    %cst_88 = arith.constant 1.000000e-01 : f32
    %130 = vector.broadcast %cst_88 : f32 to vector<8x256xf32>
    %131 = arith.mulf %130, %127 : vector<8x256xf32>
    %132 = arith.select %129, %127, %131 : vector<8x256xi1>, vector<8x256xf32>
    %133 = arith.addf %132, %13 : vector<8x256xf32>
    %134 = vector.broadcast %2 : vector<1x256xf32> to vector<8x256xf32>
    %135 = arith.mulf %133, %134 : vector<8x256xf32>
    %c1_i32_89 = arith.constant 1 : i32
    %136 = tpu.dynamic_rotate %135 by %c1_i32_89 dim 1 : vector<8x256xf32>, i32 -> vector<8x256xf32>
    %c255_i32_90 = arith.constant 255 : i32
    %137 = tpu.dynamic_rotate %135 by %c255_i32_90 dim 1 : vector<8x256xf32>, i32 -> vector<8x256xf32>
    %138 = tpu.concatenate %136, %135, %137 in 0 : vector<8x256xf32>, vector<8x256xf32>, vector<8x256xf32> -> vector<24x256xf32>
    %cst_91 = arith.constant dense<0.000000e+00> : vector<3x256xf32>
    %139 = tpu.matmul %113, %138, %cst_91 {dimension_numbers = #tpu.dot_dimension_numbers<[1], [0], [0], [1], [0, 0, 1, 1], [], []>} : vector<3x24xf32>, vector<24x256xf32>, vector<3x256xf32> -> vector<3x256xf32>
    %140 = vector.broadcast %114 : vector<3x1xf32> to vector<3x256xf32>
    %141 = arith.addf %139, %140 : vector<3x256xf32>
    %c0_92 = arith.constant 0 : index
    %c0_93 = arith.constant 0 : index
    %c0_94 = arith.constant 0 : index
    %142 = vector.load %arg25[%c0_92, %c0_93, %c0_94] : memref<1x3x256xf32, #tpu.memory_space<vmem>>, vector<1x3x256xf32>
    %143 = vector.shape_cast %142 : vector<1x3x256xf32> to vector<3x256xf32>
    %144 = vector.shape_cast %141 : vector<3x256xf32> to vector<1x3x256xf32>
    tpu.vector_store %arg25[%c0_92, %c0_93, %c0_94], %144 {strides = array<i32>} : memref<1x3x256xf32, #tpu.memory_space<vmem>>, vector<1x3x256xf32>,
    return
  }
  func.func @transform_0(%arg0: i32) -> (i32, i32, i32) {
    %c0_i32 = arith.constant 0 : i32
    %c0_i32_0 = arith.constant 0 : i32
    %c0_i32_1 = arith.constant 0 : i32
    return %arg0, %c0_i32, %c0_i32_0 : i32, i32, i32
  }
  func.func @transform_1(%arg0: i32) -> (i32, i32, i32) {
    %c0_i32 = arith.constant 0 : i32
    %c0_i32_0 = arith.constant 0 : i32
    %c0_i32_1 = arith.constant 0 : i32
    return %arg0, %c0_i32, %c0_i32_0 : i32, i32, i32
  }
  func.func @transform_2(%arg0: i32) -> (i32, i32, i32) {
    %c0_i32 = arith.constant 0 : i32
    %c0_i32_0 = arith.constant 0 : i32
    %c0_i32_1 = arith.constant 0 : i32
    return %arg0, %c0_i32, %c0_i32_0 : i32, i32, i32
  }
  func.func @transform_3(%arg0: i32) -> (i32, i32) {
    %c0_i32 = arith.constant 0 : i32
    %c0_i32_0 = arith.constant 0 : i32
    %c0_i32_1 = arith.constant 0 : i32
    return %c0_i32, %c0_i32_0 : i32, i32
  }
  func.func @transform_4(%arg0: i32) -> (i32, i32) {
    %c0_i32 = arith.constant 0 : i32
    %c0_i32_0 = arith.constant 0 : i32
    %c0_i32_1 = arith.constant 0 : i32
    return %c0_i32, %c0_i32_0 : i32, i32
  }
  func.func @transform_5(%arg0: i32) -> (i32, i32) {
    %c0_i32 = arith.constant 0 : i32
    %c0_i32_0 = arith.constant 0 : i32
    %c0_i32_1 = arith.constant 0 : i32
    return %c0_i32, %c0_i32_0 : i32, i32
  }
  func.func @transform_6(%arg0: i32) -> (i32, i32) {
    %c0_i32 = arith.constant 0 : i32
    %c0_i32_0 = arith.constant 0 : i32
    %c0_i32_1 = arith.constant 0 : i32
    return %c0_i32, %c0_i32_0 : i32, i32
  }
  func.func @transform_7(%arg0: i32) -> (i32, i32, i32) {
    %c0_i32 = arith.constant 0 : i32
    %c0_i32_0 = arith.constant 0 : i32
    %c0_i32_1 = arith.constant 0 : i32
    %c0_i32_2 = arith.constant 0 : i32
    return %c0_i32, %c0_i32_0, %c0_i32_1 : i32, i32, i32
  }
  func.func @transform_8(%arg0: i32) -> (i32, i32) {
    %c0_i32 = arith.constant 0 : i32
    %c0_i32_0 = arith.constant 0 : i32
    %c0_i32_1 = arith.constant 0 : i32
    return %c0_i32, %c0_i32_0 : i32, i32
  }
  func.func @transform_9(%arg0: i32) -> (i32, i32) {
    %c0_i32 = arith.constant 0 : i32
    %c0_i32_0 = arith.constant 0 : i32
    %c0_i32_1 = arith.constant 0 : i32
    return %c0_i32, %c0_i32_0 : i32, i32
  }
  func.func @transform_10(%arg0: i32) -> (i32, i32) {
    %c0_i32 = arith.constant 0 : i32
    %c0_i32_0 = arith.constant 0 : i32
    %c0_i32_1 = arith.constant 0 : i32
    return %c0_i32, %c0_i32_0 : i32, i32
  }
  func.func @transform_11(%arg0: i32) -> (i32, i32) {
    %c0_i32 = arith.constant 0 : i32
    %c0_i32_0 = arith.constant 0 : i32
    %c0_i32_1 = arith.constant 0 : i32
    return %c0_i32, %c0_i32_0 : i32, i32
  }
  func.func @transform_12(%arg0: i32) -> (i32, i32) {
    %c0_i32 = arith.constant 0 : i32
    %c0_i32_0 = arith.constant 0 : i32
    %c0_i32_1 = arith.constant 0 : i32
    return %c0_i32, %c0_i32_0 : i32, i32
  }
  func.func @transform_13(%arg0: i32) -> (i32, i32) {
    %c0_i32 = arith.constant 0 : i32
    %c0_i32_0 = arith.constant 0 : i32
    %c0_i32_1 = arith.constant 0 : i32
    return %c0_i32, %c0_i32_0 : i32, i32
  }
  func.func @transform_14(%arg0: i32) -> (i32, i32) {
    %c0_i32 = arith.constant 0 : i32
    %c0_i32_0 = arith.constant 0 : i32
    %c0_i32_1 = arith.constant 0 : i32
    return %c0_i32, %c0_i32_0 : i32, i32
  }
  func.func @transform_15(%arg0: i32) -> (i32, i32) {
    %c0_i32 = arith.constant 0 : i32
    %c0_i32_0 = arith.constant 0 : i32
    %c0_i32_1 = arith.constant 0 : i32
    return %c0_i32, %c0_i32_0 : i32, i32
  }
  func.func @transform_16(%arg0: i32) -> (i32, i32) {
    %c0_i32 = arith.constant 0 : i32
    %c0_i32_0 = arith.constant 0 : i32
    %c0_i32_1 = arith.constant 0 : i32
    return %c0_i32, %c0_i32_0 : i32, i32
  }
  func.func @transform_17(%arg0: i32) -> (i32, i32) {
    %c0_i32 = arith.constant 0 : i32
    %c0_i32_0 = arith.constant 0 : i32
    %c0_i32_1 = arith.constant 0 : i32
    return %c0_i32, %c0_i32_0 : i32, i32
  }
  func.func @transform_18(%arg0: i32) -> (i32, i32) {
    %c0_i32 = arith.constant 0 : i32
    %c0_i32_0 = arith.constant 0 : i32
    %c0_i32_1 = arith.constant 0 : i32
    return %c0_i32, %c0_i32_0 : i32, i32
  }
  func.func @transform_19(%arg0: i32) -> (i32, i32) {
    %c0_i32 = arith.constant 0 : i32
    %c0_i32_0 = arith.constant 0 : i32
    %c0_i32_1 = arith.constant 0 : i32
    return %c0_i32, %c0_i32_0 : i32, i32
  }
  func.func @transform_20(%arg0: i32) -> (i32, i32) {
    %c0_i32 = arith.constant 0 : i32
    %c0_i32_0 = arith.constant 0 : i32
    %c0_i32_1 = arith.constant 0 : i32
    return %c0_i32, %c0_i32_0 : i32, i32
  }
  func.func @transform_21(%arg0: i32) -> (i32, i32) {
    %c0_i32 = arith.constant 0 : i32
    %c0_i32_0 = arith.constant 0 : i32
    %c0_i32_1 = arith.constant 0 : i32
    return %c0_i32, %c0_i32_0 : i32, i32
  }
  func.func @transform_22(%arg0: i32) -> (i32, i32) {
    %c0_i32 = arith.constant 0 : i32
    %c0_i32_0 = arith.constant 0 : i32
    %c0_i32_1 = arith.constant 0 : i32
    return %c0_i32, %c0_i32_0 : i32, i32
  }
  func.func @transform_23(%arg0: i32) -> (i32, i32) {
    %c0_i32 = arith.constant 0 : i32
    %c0_i32_0 = arith.constant 0 : i32
    %c0_i32_1 = arith.constant 0 : i32
    return %c0_i32, %c0_i32_0 : i32, i32
  }
  func.func @transform_24(%arg0: i32) -> (i32, i32, i32) {
    %c0_i32 = arith.constant 0 : i32
    %c0_i32_0 = arith.constant 0 : i32
    %c0_i32_1 = arith.constant 0 : i32
    return %arg0, %c0_i32, %c0_i32_0 : i32, i32, i32
  }
}

</mosaic_0001>

<llo_original>
// kernel: sci_mr_res_forward.1
$region0: #{sci_mr_res_forward.1}
  #allocation0 [shape = 'u32[]', space=smem, size = 0x4, offset = 0x4, fixed_abs, tag = 'smem constant byte address 0x4 - core index']
  #allocation1 [shape = 'u32[144,128]{1,0:T(1,128)}', space=vmem, size = 0x12000, scoped, tag = 'internal scratch']
  %s0 = inlined_call_operand.vmem [shape: f32[2,40,8], index: 0, kind: input, shape index: {}]
  %s1 = inlined_call_operand.vmem [shape: f32[2,8,256], index: 1, kind: input, shape index: {}]
  %s2 = inlined_call_operand.vmem [shape: f32[2,8,256], index: 2, kind: input, shape index: {}]
  %s3 = inlined_call_operand.vmem [shape: f32[1,256], index: 3, kind: input, shape index: {}]
  %s4 = inlined_call_operand.vmem [shape: f32[1,256], index: 4, kind: input, shape index: {}]
  %s5 = inlined_call_operand.vmem [shape: f32[8,256], index: 5, kind: input, shape index: {}]
  %s6 = inlined_call_operand.vmem [shape: f32[8,256], index: 6, kind: input, shape index: {}]
  %s7 = inlined_call_operand.vmem [shape: f32[2,128,128], index: 7, kind: input, shape index: {}]
  %s8 = inlined_call_operand.vmem [shape: f32[8,24], index: 8, kind: input, shape index: {}]
  %s9 = inlined_call_operand.vmem [shape: f32[8,1], index: 9, kind: input, shape index: {}]
  %s10 = inlined_call_operand.vmem [shape: f32[8,24], index: 10, kind: input, shape index: {}]
  %s11 = inlined_call_operand.vmem [shape: f32[8,1], index: 11, kind: input, shape index: {}]
  %s12 = inlined_call_operand.vmem [shape: f32[8,24], index: 12, kind: input, shape index: {}]
  %s13 = inlined_call_operand.vmem [shape: f32[8,1], index: 13, kind: input, shape index: {}]
  %s14 = inlined_call_operand.vmem [shape: f32[8,24], index: 14, kind: input, shape index: {}]
  %s15 = inlined_call_operand.vmem [shape: f32[8,1], index: 15, kind: input, shape index: {}]
  %s16 = inlined_call_operand.vmem [shape: f32[16,48], index: 16, kind: input, shape index: {}]
  %s17 = inlined_call_operand.vmem [shape: f32[16,1], index: 17, kind: input, shape index: {}]
  %s18 = inlined_call_operand.vmem [shape: f32[8,48], index: 18, kind: input, shape index: {}]
  %s19 = inlined_call_operand.vmem [shape: f32[8,1], index: 19, kind: input, shape index: {}]
  %s20 = inlined_call_operand.vmem [shape: f32[8,24], index: 20, kind: input, shape index: {}]
  %s21 = inlined_call_operand.vmem [shape: f32[8,1], index: 21, kind: input, shape index: {}]
  %s22 = inlined_call_operand.vmem [shape: f32[3,24], index: 22, kind: input, shape index: {}]
  %s23 = inlined_call_operand.vmem [shape: f32[3,1], index: 23, kind: input, shape index: {}]
  %s24 = inlined_call_operand.vmem [shape: f32[2,3,256], index: 24, kind: output, shape index: {}]
  %s25 = sld [smem:[#allocation0]]
  $region129: #{sci_mr_res_forward.1} parent=0
    _
  %s27 = ssub.s32 1, %s25
  %s28 = scalar_select 0, %s27, %s25
  loop: start=0, step=1, limit=4
  $region2: #{sci_mr_res_forward.1} parent=0 // loop_pre_header
    _
  $region3: #{sci_mr_res_forward.1} parent=0 // loop_header
    %s30 = sphi 0, %s34
    %p31 = scmp.ge.s32.totalorder %s30, 4
    %s40 = sphi 0, %s42
    %s43 = sphi 0, %s40
    %s44 = sphi 0, %s43
    %s60 = sphi 0, %s44
    %s66 = sphi 0, %s68
    %s69 = sphi 0, %s66
    %s70 = sphi 0, %s69
    %s86 = sphi 0, %s70
    %s92 = sphi 0, %s94
    %s95 = sphi 0, %s92
    %s96 = sphi 0, %s95
    %s112 = sphi 0, %s96
    %s116 = sphi 0, %s116
    %s118 = sphi 0, %s116
    %s119 = sphi 0, %s118
    %s133 = sphi 0, %s119
    %s137 = sphi 0, %s137
    %s139 = sphi 0, %s137
    %s140 = sphi 0, %s139
    %s154 = sphi 0, %s140
    %s158 = sphi 0, %s158
    %s160 = sphi 0, %s158
    %s161 = sphi 0, %s160
    %s175 = sphi 0, %s161
    %s179 = sphi 0, %s179
    %s181 = sphi 0, %s179
    %s182 = sphi 0, %s181
    %s196 = sphi 0, %s182
    %s200 = sphi 0, %s200
    %s202 = sphi 0, %s200
    %s203 = sphi 0, %s202
    %s217 = sphi 0, %s203
    %s221 = sphi 0, %s221
    %s223 = sphi 0, %s221
    %s224 = sphi 0, %s223
    %s238 = sphi 0, %s224
    %s242 = sphi 0, %s242
    %s244 = sphi 0, %s242
    %s245 = sphi 0, %s244
    %s259 = sphi 0, %s245
    %s263 = sphi 0, %s263
    %s265 = sphi 0, %s263
    %s266 = sphi 0, %s265
    %s280 = sphi 0, %s266
    %s284 = sphi 0, %s284
    %s286 = sphi 0, %s284
    %s287 = sphi 0, %s286
    %s301 = sphi 0, %s287
    %s305 = sphi 0, %s305
    %s307 = sphi 0, %s305
    %s308 = sphi 0, %s307
    %s322 = sphi 0, %s308
    %s326 = sphi 0, %s326
    %s328 = sphi 0, %s326
    %s329 = sphi 0, %s328
    %s343 = sphi 0, %s329
    %s347 = sphi 0, %s347
    %s349 = sphi 0, %s347
    %s350 = sphi 0, %s349
    %s364 = sphi 0, %s350
    %s368 = sphi 0, %s368
    %s370 = sphi 0, %s368
    %s371 = sphi 0, %s370
    %s385 = sphi 0, %s371
    %s389 = sphi 0, %s389
    %s391 = sphi 0, %s389
    %s392 = sphi 0, %s391
    %s406 = sphi 0, %s392
    %s410 = sphi 0, %s410
    %s412 = sphi 0, %s410
    %s413 = sphi 0, %s412
    %s427 = sphi 0, %s413
    %s431 = sphi 0, %s431
    %s433 = sphi 0, %s431
    %s434 = sphi 0, %s433
    %s448 = sphi 0, %s434
    %s452 = sphi 0, %s452
    %s454 = sphi 0, %s452
    %s455 = sphi 0, %s454
    %s469 = sphi 0, %s455
    %s473 = sphi 0, %s473
    %s475 = sphi 0, %s473
    %s476 = sphi 0, %s475
    %s490 = sphi 0, %s476
    %s494 = sphi 0, %s494
    %s496 = sphi 0, %s494
    %s497 = sphi 0, %s496
    %s511 = sphi 0, %s497
    %s515 = sphi 0, %s515
    %s517 = sphi 0, %s515
    %s518 = sphi 0, %s517
    %s532 = sphi 0, %s518
    %s536 = sphi 0, %s536
    %s538 = sphi 0, %s536
    %s539 = sphi 0, %s538
    %s553 = sphi 0, %s539
    %s559 = sphi 0, %s561
    %s562 = sphi 0, %s559
    %s563 = sphi 0, %s562
    %s579 = sphi 0, %s563
  $region4: #{sci_mr_res_forward.1} parent=0 // loop_header_branch
    %33 = sbr.rel (%p31) target = $region8
  $region5: #{sci_mr_res_forward.1} parent=0 // loop_body
    %s35 = ssub.s32 %s30, 1
    %s36 = ssub.s32 %s30, 2
    %s37 = sadd.s32 %s30, 1
    %s38 = ssub.s32 %s30, %s37
    %p39 = scmp.eq.s32.totalorder %s38, 0
    %s41 = sadd.s32 %s40, 1
    %s42 = scalar_select %p39, %s40, %s41
    %p45 = pneg %p39
    %p46 = scmp.eq.s32.totalorder %s30, 1
    %p47 = por %p45, %p46
    %p48 = scmp.ne.s32.totalorder %s40, %s43
    %p49 = scmp.eq.s32.totalorder %s30, 0
    %p50 = por %p48, %p49
    %p51 = scmp.ne.s32.totalorder %s40, %s43
    %p52 = scmp.eq.s32.totalorder %s35, 1
    %p53 = por %p51, %p52
    %p54 = scmp.ne.s32.totalorder %s43, %s44
    %p55 = scmp.eq.s32.totalorder %s35, 0
    %p56 = por %p54, %p55
    %p57 = scmp.ne.s32.totalorder %s43, %s44
    %p58 = scmp.eq.s32.totalorder %s36, 1
    %p59 = por %p57, %p58
    %p61 = scmp.ne.s32.totalorder %s44, %s60
    %p62 = scmp.eq.s32.totalorder %s36, 0
    %p63 = por %p61, %p62
    %s64 = ssub.s32 %s30, %s37
    %p65 = scmp.eq.s32.totalorder %s64, 0
    %s67 = sadd.s32 %s66, 1
    %s68 = scalar_select %p65, %s66, %s67
    %p71 = pneg %p65
    %p72 = scmp.eq.s32.totalorder %s30, 1
    %p73 = por %p71, %p72
    %p74 = scmp.ne.s32.totalorder %s66, %s69
    %p75 = scmp.eq.s32.totalorder %s30, 0
    %p76 = por %p74, %p75
    %p77 = scmp.ne.s32.totalorder %s66, %s69
    %p78 = scmp.eq.s32.totalorder %s35, 1
    %p79 = por %p77, %p78
    %p80 = scmp.ne.s32.totalorder %s69, %s70
    %p81 = scmp.eq.s32.totalorder %s35, 0
    %p82 = por %p80, %p81
    %p83 = scmp.ne.s32.totalorder %s69, %s70
    %p84 = scmp.eq.s32.totalorder %s36, 1
    %p85 = por %p83, %p84
    %p87 = scmp.ne.s32.totalorder %s70, %s86
    %p88 = scmp.eq.s32.totalorder %s36, 0
    %p89 = por %p87, %p88
    %s90 = ssub.s32 %s30, %s37
    %p91 = scmp.eq.s32.totalorder %s90, 0
    %s93 = sadd.s32 %s92, 1
    %s94 = scalar_select %p91, %s92, %s93
    %p97 = pneg %p91
    %p98 = scmp.eq.s32.totalorder %s30, 1
    %p99 = por %p97, %p98
    %p100 = scmp.ne.s32.totalorder %s92, %s95
    %p101 = scmp.eq.s32.totalorder %s30, 0
    %p102 = por %p100, %p101
    %p103 = scmp.ne.s32.totalorder %s92, %s95
    %p104 = scmp.eq.s32.totalorder %s35, 1
    %p105 = por %p103, %p104
    %p106 = scmp.ne.s32.totalorder %s95, %s96
    %p107 = scmp.eq.s32.totalorder %s35, 0
    %p108 = por %p106, %p107
    %p109 = scmp.ne.s32.totalorder %s95, %s96
    %p110 = scmp.eq.s32.totalorder %s36, 1
    %p111 = por %p109, %p110
    %p113 = scmp.ne.s32.totalorder %s96, %s112
    %p114 = scmp.eq.s32.totalorder %s36, 0
    %p115 = por %p113, %p114
    %s117 = sadd.s32 %s116, 1
    %p120 = scmp.eq.s32.totalorder %s30, 1
    %p121 = scmp.ne.s32.totalorder %s116, %s118
    %p122 = scmp.eq.s32.totalorder %s30, 0
    %p123 = por %p121, %p122
    %p124 = scmp.ne.s32.totalorder %s116, %s118
    %p125 = scmp.eq.s32.totalorder %s35, 1
    %p126 = por %p124, %p125
    %p127 = scmp.ne.s32.totalorder %s118, %s119
    %p128 = scmp.eq.s32.totalorder %s35, 0
    %p129 = por %p127, %p128
    %p130 = scmp.ne.s32.totalorder %s118, %s119
    %p131 = scmp.eq.s32.totalorder %s36, 1
    %p132 = por %p130, %p131
    %p134 = scmp.ne.s32.totalorder %s119, %s133
    %p135 = scmp.eq.s32.totalorder %s36, 0
    %p136 = por %p134, %p135
    %s138 = sadd.s32 %s137, 1
    %p141 = scmp.eq.s32.totalorder %s30, 1
    %p142 = scmp.ne.s32.totalorder %s137, %s139
    %p143 = scmp.eq.s32.totalorder %s30, 0
    %p144 = por %p142, %p143
    %p145 = scmp.ne.s32.totalorder %s137, %s139
    %p146 = scmp.eq.s32.totalorder %s35, 1
    %p147 = por %p145, %p146
    %p148 = scmp.ne.s32.totalorder %s139, %s140
    %p149 = scmp.eq.s32.totalorder %s35, 0
    %p150 = por %p148, %p149
    %p151 = scmp.ne.s32.totalorder %s139, %s140
    %p152 = scmp.eq.s32.totalorder %s36, 1
    %p153 = por %p151, %p152
    %p155 = scmp.ne.s32.totalorder %s140, %s154
    %p156 = scmp.eq.s32.totalorder %s36, 0
    %p157 = por %p155, %p156
    %s159 = sadd.s32 %s158, 1
    %p162 = scmp.eq.s32.totalorder %s30, 1
    %p163 = scmp.ne.s32.totalorder %s158, %s160
    %p164 = scmp.eq.s32.totalorder %s30, 0
    %p165 = por %p163, %p164
    %p166 = scmp.ne.s32.totalorder %s158, %s160
    %p167 = scmp.eq.s32.totalorder %s35, 1
    %p168 = por %p166, %p167
    %p169 = scmp.ne.s32.totalorder %s160, %s161
    %p170 = scmp.eq.s32.totalorder %s35, 0
    %p171 = por %p169, %p170
    %p172 = scmp.ne.s32.totalorder %s160, %s161
    %p173 = scmp.eq.s32.totalorder %s36, 1
    %p174 = por %p172, %p173
    %p176 = scmp.ne.s32.totalorder %s161, %s175
    %p177 = scmp.eq.s32.totalorder %s36, 0
    %p178 = por %p176, %p177
    %s180 = sadd.s32 %s179, 1
    %p183 = scmp.eq.s32.totalorder %s30, 1
    %p184 = scmp.ne.s32.totalorder %s179, %s181
    %p185 = scmp.eq.s32.totalorder %s30, 0
    %p186 = por %p184, %p185
    %p187 = scmp.ne.s32.totalorder %s179, %s181
    %p188 = scmp.eq.s32.totalorder %s35, 1
    %p189 = por %p187, %p188
    %p190 = scmp.ne.s32.totalorder %s181, %s182
    %p191 = scmp.eq.s32.totalorder %s35, 0
    %p192 = por %p190, %p191
    %p193 = scmp.ne.s32.totalorder %s181, %s182
    %p194 = scmp.eq.s32.totalorder %s36, 1
    %p195 = por %p193, %p194
    %p197 = scmp.ne.s32.totalorder %s182, %s196
    %p198 = scmp.eq.s32.totalorder %s36, 0
    %p199 = por %p197, %p198
    %s201 = sadd.s32 %s200, 1
    %p204 = scmp.eq.s32.totalorder %s30, 1
    %p205 = scmp.ne.s32.totalorder %s200, %s202
    %p206 = scmp.eq.s32.totalorder %s30, 0
    %p207 = por %p205, %p206
    %p208 = scmp.ne.s32.totalorder %s200, %s202
    %p209 = scmp.eq.s32.totalorder %s35, 1
    %p210 = por %p208, %p209
    %p211 = scmp.ne.s32.totalorder %s202, %s203
    %p212 = scmp.eq.s32.totalorder %s35, 0
    %p213 = por %p211, %p212
    %p214 = scmp.ne.s32.totalorder %s202, %s203
    %p215 = scmp.eq.s32.totalorder %s36, 1
    %p216 = por %p214, %p215
    %p218 = scmp.ne.s32.totalorder %s203, %s217
    %p219 = scmp.eq.s32.totalorder %s36, 0
    %p220 = por %p218, %p219
    %s222 = sadd.s32 %s221, 1
    %p225 = scmp.eq.s32.totalorder %s30, 1
    %p226 = scmp.ne.s32.totalorder %s221, %s223
    %p227 = scmp.eq.s32.totalorder %s30, 0
    %p228 = por %p226, %p227
    %p229 = scmp.ne.s32.totalorder %s221, %s223
    %p230 = scmp.eq.s32.totalorder %s35, 1
    %p231 = por %p229, %p230
    %p232 = scmp.ne.s32.totalorder %s223, %s224
    %p233 = scmp.eq.s32.totalorder %s35, 0
    %p234 = por %p232, %p233
    %p235 = scmp.ne.s32.totalorder %s223, %s224
    %p236 = scmp.eq.s32.totalorder %s36, 1
    %p237 = por %p235, %p236
    %p239 = scmp.ne.s32.totalorder %s224, %s238
    %p240 = scmp.eq.s32.totalorder %s36, 0
    %p241 = por %p239, %p240
    %s243 = sadd.s32 %s242, 1
    %p246 = scmp.eq.s32.totalorder %s30, 1
    %p247 = scmp.ne.s32.totalorder %s242, %s244
    %p248 = scmp.eq.s32.totalorder %s30, 0
    %p249 = por %p247, %p248
    %p250 = scmp.ne.s32.totalorder %s242, %s244
    %p251 = scmp.eq.s32.totalorder %s35, 1
    %p252 = por %p250, %p251
    %p253 = scmp.ne.s32.totalorder %s244, %s245
    %p254 = scmp.eq.s32.totalorder %s35, 0
    %p255 = por %p253, %p254
    %p256 = scmp.ne.s32.totalorder %s244, %s245
    %p257 = scmp.eq.s32.totalorder %s36, 1
    %p258 = por %p256, %p257
    %p260 = scmp.ne.s32.totalorder %s245, %s259
    %p261 = scmp.eq.s32.totalorder %s36, 0
    %p262 = por %p260, %p261
    %s264 = sadd.s32 %s263, 1
    %p267 = scmp.eq.s32.totalorder %s30, 1
    %p268 = scmp.ne.s32.totalorder %s263, %s265
    %p269 = scmp.eq.s32.totalorder %s30, 0
    %p270 = por %p268, %p269
    %p271 = scmp.ne.s32.totalorder %s263, %s265
    %p272 = scmp.eq.s32.totalorder %s35, 1
    %p273 = por %p271, %p272
    %p274 = scmp.ne.s32.totalorder %s265, %s266
    %p275 = scmp.eq.s32.totalorder %s35, 0
    %p276 = por %p274, %p275
    %p277 = scmp.ne.s32.totalorder %s265, %s266
    %p278 = scmp.eq.s32.totalorder %s36, 1
    %p279 = por %p277, %p278
    %p281 = scmp.ne.s32.totalorder %s266, %s280
    %p282 = scmp.eq.s32.totalorder %s36, 0
    %p283 = por %p281, %p282
    %s285 = sadd.s32 %s284, 1
    %p288 = scmp.eq.s32.totalorder %s30, 1
    %p289 = scmp.ne.s32.totalorder %s284, %s286
    %p290 = scmp.eq.s32.totalorder %s30, 0
    %p291 = por %p289, %p290
    %p292 = scmp.ne.s32.totalorder %s284, %s286
    %p293 = scmp.eq.s32.totalorder %s35, 1
    %p294 = por %p292, %p293
    %p295 = scmp.ne.s32.totalorder %s286, %s287
    %p296 = scmp.eq.s32.totalorder %s35, 0
    %p297 = por %p295, %p296
    %p298 = scmp.ne.s32.totalorder %s286, %s287
    %p299 = scmp.eq.s32.totalorder %s36, 1
    %p300 = por %p298, %p299
    %p302 = scmp.ne.s32.totalorder %s287, %s301
    %p303 = scmp.eq.s32.totalorder %s36, 0
    %p304 = por %p302, %p303
    %s306 = sadd.s32 %s305, 1
    %p309 = scmp.eq.s32.totalorder %s30, 1
    %p310 = scmp.ne.s32.totalorder %s305, %s307
    %p311 = scmp.eq.s32.totalorder %s30, 0
    %p312 = por %p310, %p311
    %p313 = scmp.ne.s32.totalorder %s305, %s307
    %p314 = scmp.eq.s32.totalorder %s35, 1
    %p315 = por %p313, %p314
    %p316 = scmp.ne.s32.totalorder %s307, %s308
    %p317 = scmp.eq.s32.totalorder %s35, 0
    %p318 = por %p316, %p317
    %p319 = scmp.ne.s32.totalorder %s307, %s308
    %p320 = scmp.eq.s32.totalorder %s36, 1
    %p321 = por %p319, %p320
    %p323 = scmp.ne.s32.totalorder %s308, %s322
    %p324 = scmp.eq.s32.totalorder %s36, 0
    %p325 = por %p323, %p324
    %s327 = sadd.s32 %s326, 1
    %p330 = scmp.eq.s32.totalorder %s30, 1
    %p331 = scmp.ne.s32.totalorder %s326, %s328
    %p332 = scmp.eq.s32.totalorder %s30, 0
    %p333 = por %p331, %p332
    %p334 = scmp.ne.s32.totalorder %s326, %s328
    %p335 = scmp.eq.s32.totalorder %s35, 1
    %p336 = por %p334, %p335
    %p337 = scmp.ne.s32.totalorder %s328, %s329
    %p338 = scmp.eq.s32.totalorder %s35, 0
    %p339 = por %p337, %p338
    %p340 = scmp.ne.s32.totalorder %s328, %s329
    %p341 = scmp.eq.s32.totalorder %s36, 1
    %p342 = por %p340, %p341
    %p344 = scmp.ne.s32.totalorder %s329, %s343
    %p345 = scmp.eq.s32.totalorder %s36, 0
    %p346 = por %p344, %p345
    %s348 = sadd.s32 %s347, 1
    %p351 = scmp.eq.s32.totalorder %s30, 1
    %p352 = scmp.ne.s32.totalorder %s347, %s349
    %p353 = scmp.eq.s32.totalorder %s30, 0
    %p354 = por %p352, %p353
    %p355 = scmp.ne.s32.totalorder %s347, %s349
    %p356 = scmp.eq.s32.totalorder %s35, 1
    %p357 = por %p355, %p356
    %p358 = scmp.ne.s32.totalorder %s349, %s350
    %p359 = scmp.eq.s32.totalorder %s35, 0
    %p360 = por %p358, %p359
    %p361 = scmp.ne.s32.totalorder %s349, %s350
    %p362 = scmp.eq.s32.totalorder %s36, 1
    %p363 = por %p361, %p362
    %p365 = scmp.ne.s32.totalorder %s350, %s364
    %p366 = scmp.eq.s32.totalorder %s36, 0
    %p367 = por %p365, %p366
    %s369 = sadd.s32 %s368, 1
    %p372 = scmp.eq.s32.totalorder %s30, 1
    %p373 = scmp.ne.s32.totalorder %s368, %s370
    %p374 = scmp.eq.s32.totalorder %s30, 0
    %p375 = por %p373, %p374
    %p376 = scmp.ne.s32.totalorder %s368, %s370
    %p377 = scmp.eq.s32.totalorder %s35, 1
    %p378 = por %p376, %p377
    %p379 = scmp.ne.s32.totalorder %s370, %s371
    %p380 = scmp.eq.s32.totalorder %s35, 0
    %p381 = por %p379, %p380
    %p382 = scmp.ne.s32.totalorder %s370, %s371
    %p383 = scmp.eq.s32.totalorder %s36, 1
    %p384 = por %p382, %p383
    %p386 = scmp.ne.s32.totalorder %s371, %s385
    %p387 = scmp.eq.s32.totalorder %s36, 0
    %p388 = por %p386, %p387
    %s390 = sadd.s32 %s389, 1
    %p393 = scmp.eq.s32.totalorder %s30, 1
    %p394 = scmp.ne.s32.totalorder %s389, %s391
    %p395 = scmp.eq.s32.totalorder %s30, 0
    %p396 = por %p394, %p395
    %p397 = scmp.ne.s32.totalorder %s389, %s391
    %p398 = scmp.eq.s32.totalorder %s35, 1
    %p399 = por %p397, %p398
    %p400 = scmp.ne.s32.totalorder %s391, %s392
    %p401 = scmp.eq.s32.totalorder %s35, 0
    %p402 = por %p400, %p401
    %p403 = scmp.ne.s32.totalorder %s391, %s392
    %p404 = scmp.eq.s32.totalorder %s36, 1
    %p405 = por %p403, %p404
    %p407 = scmp.ne.s32.totalorder %s392, %s406
    %p408 = scmp.eq.s32.totalorder %s36, 0
    %p409 = por %p407, %p408
    %s411 = sadd.s32 %s410, 1
    %p414 = scmp.eq.s32.totalorder %s30, 1
    %p415 = scmp.ne.s32.totalorder %s410, %s412
    %p416 = scmp.eq.s32.totalorder %s30, 0
    %p417 = por %p415, %p416
    %p418 = scmp.ne.s32.totalorder %s410, %s412
    %p419 = scmp.eq.s32.totalorder %s35, 1
    %p420 = por %p418, %p419
    %p421 = scmp.ne.s32.totalorder %s412, %s413
    %p422 = scmp.eq.s32.totalorder %s35, 0
    %p423 = por %p421, %p422
    %p424 = scmp.ne.s32.totalorder %s412, %s413
    %p425 = scmp.eq.s32.totalorder %s36, 1
    %p426 = por %p424, %p425
    %p428 = scmp.ne.s32.totalorder %s413, %s427
    %p429 = scmp.eq.s32.totalorder %s36, 0
    %p430 = por %p428, %p429
    %s432 = sadd.s32 %s431, 1
    %p435 = scmp.eq.s32.totalorder %s30, 1
    %p436 = scmp.ne.s32.totalorder %s431, %s433
    %p437 = scmp.eq.s32.totalorder %s30, 0
    %p438 = por %p436, %p437
    %p439 = scmp.ne.s32.totalorder %s431, %s433
    %p440 = scmp.eq.s32.totalorder %s35, 1
    %p441 = por %p439, %p440
    %p442 = scmp.ne.s32.totalorder %s433, %s434
    %p443 = scmp.eq.s32.totalorder %s35, 0
    %p444 = por %p442, %p443
    %p445 = scmp.ne.s32.totalorder %s433, %s434
    %p446 = scmp.eq.s32.totalorder %s36, 1
    %p447 = por %p445, %p446
    %p449 = scmp.ne.s32.totalorder %s434, %s448
    %p450 = scmp.eq.s32.totalorder %s36, 0
    %p451 = por %p449, %p450
    %s453 = sadd.s32 %s452, 1
    %p456 = scmp.eq.s32.totalorder %s30, 1
    %p457 = scmp.ne.s32.totalorder %s452, %s454
    %p458 = scmp.eq.s32.totalorder %s30, 0
    %p459 = por %p457, %p458
    %p460 = scmp.ne.s32.totalorder %s452, %s454
    %p461 = scmp.eq.s32.totalorder %s35, 1
    %p462 = por %p460, %p461
    %p463 = scmp.ne.s32.totalorder %s454, %s455
    %p464 = scmp.eq.s32.totalorder %s35, 0
    %p465 = por %p463, %p464
    %p466 = scmp.ne.s32.totalorder %s454, %s455
    %p467 = scmp.eq.s32.totalorder %s36, 1
    %p468 = por %p466, %p467
    %p470 = scmp.ne.s32.totalorder %s455, %s469
    %p471 = scmp.eq.s32.totalorder %s36, 0
    %p472 = por %p470, %p471
    %s474 = sadd.s32 %s473, 1
    %p477 = scmp.eq.s32.totalorder %s30, 1
    %p478 = scmp.ne.s32.totalorder %s473, %s475
    %p479 = scmp.eq.s32.totalorder %s30, 0
    %p480 = por %p478, %p479
    %p481 = scmp.ne.s32.totalorder %s473, %s475
    %p482 = scmp.eq.s32.totalorder %s35, 1
    %p483 = por %p481, %p482
    %p484 = scmp.ne.s32.totalorder %s475, %s476
    %p485 = scmp.eq.s32.totalorder %s35, 0
    %p486 = por %p484, %p485
    %p487 = scmp.ne.s32.totalorder %s475, %s476
    %p488 = scmp.eq.s32.totalorder %s36, 1
    %p489 = por %p487, %p488
    %p491 = scmp.ne.s32.totalorder %s476, %s490
    %p492 = scmp.eq.s32.totalorder %s36, 0
    %p493 = por %p491, %p492
    %s495 = sadd.s32 %s494, 1
    %p498 = scmp.eq.s32.totalorder %s30, 1
    %p499 = scmp.ne.s32.totalorder %s494, %s496
    %p500 = scmp.eq.s32.totalorder %s30, 0
    %p501 = por %p499, %p500
    %p502 = scmp.ne.s32.totalorder %s494, %s496
    %p503 = scmp.eq.s32.totalorder %s35, 1
    %p504 = por %p502, %p503
    %p505 = scmp.ne.s32.totalorder %s496, %s497
    %p506 = scmp.eq.s32.totalorder %s35, 0
    %p507 = por %p505, %p506
    %p508 = scmp.ne.s32.totalorder %s496, %s497
    %p509 = scmp.eq.s32.totalorder %s36, 1
    %p510 = por %p508, %p509
    %p512 = scmp.ne.s32.totalorder %s497, %s511
    %p513 = scmp.eq.s32.totalorder %s36, 0
    %p514 = por %p512, %p513
    %s516 = sadd.s32 %s515, 1
    %p519 = scmp.eq.s32.totalorder %s30, 1
    %p520 = scmp.ne.s32.totalorder %s515, %s517
    %p521 = scmp.eq.s32.totalorder %s30, 0
    %p522 = por %p520, %p521
    %p523 = scmp.ne.s32.totalorder %s515, %s517
    %p524 = scmp.eq.s32.totalorder %s35, 1
    %p525 = por %p523, %p524
    %p526 = scmp.ne.s32.totalorder %s517, %s518
    %p527 = scmp.eq.s32.totalorder %s35, 0
    %p528 = por %p526, %p527
    %p529 = scmp.ne.s32.totalorder %s517, %s518
    %p530 = scmp.eq.s32.totalorder %s36, 1
    %p531 = por %p529, %p530
    %p533 = scmp.ne.s32.totalorder %s518, %s532
    %p534 = scmp.eq.s32.totalorder %s36, 0
    %p535 = por %p533, %p534
    %s537 = sadd.s32 %s536, 1
    %p540 = scmp.eq.s32.totalorder %s30, 1
    %p541 = scmp.ne.s32.totalorder %s536, %s538
    %p542 = scmp.eq.s32.totalorder %s30, 0
    %p543 = por %p541, %p542
    %p544 = scmp.ne.s32.totalorder %s536, %s538
    %p545 = scmp.eq.s32.totalorder %s35, 1
    %p546 = por %p544, %p545
    %p547 = scmp.ne.s32.totalorder %s538, %s539
    %p548 = scmp.eq.s32.totalorder %s35, 0
    %p549 = por %p547, %p548
    %p550 = scmp.ne.s32.totalorder %s538, %s539
    %p551 = scmp.eq.s32.totalorder %s36, 1
    %p552 = por %p550, %p551
    %p554 = scmp.ne.s32.totalorder %s539, %s553
    %p555 = scmp.eq.s32.totalorder %s36, 0
    %p556 = por %p554, %p555
    %s557 = ssub.s32 %s30, %s37
    %p558 = scmp.eq.s32.totalorder %s557, 0
    %s560 = sadd.s32 %s559, 1
    %s561 = scalar_select %p558, %s559, %s560
    %p564 = pneg %p558
    %p565 = scmp.eq.s32.totalorder %s30, 1
    %p566 = por %p564, %p565
    %p567 = scmp.ne.s32.totalorder %s559, %s562
    %p568 = scmp.eq.s32.totalorder %s30, 0
    %p569 = por %p567, %p568
    %p570 = scmp.ne.s32.totalorder %s559, %s562
    %p571 = scmp.eq.s32.totalorder %s35, 1
    %p572 = por %p570, %p571
    %p573 = scmp.ne.s32.totalorder %s562, %s563
    %p574 = scmp.eq.s32.totalorder %s35, 0
    %p575 = por %p573, %p574
    %p576 = scmp.ne.s32.totalorder %s562, %s563
    %p577 = scmp.eq.s32.totalorder %s36, 1
    %p578 = por %p576, %p577
    %p580 = scmp.ne.s32.totalorder %s563, %s579
    %p581 = scmp.eq.s32.totalorder %s36, 0
    %p582 = por %p580, %p581
    %p583 = scmp.le.s32.totalorder 1, %s30
    %p584 = scmp.lt.s32.totalorder %s30, 3
    %p585 = pnand %p583, %p584
    %p586 = pneg %p585
    // Predicated region
    $region9: #{sci_mr_res_forward.1} parent=5 // pred_check
      _
    $region10: #{sci_mr_res_forward.1} parent=5 // pred_check_branch
      %588 = sbr.rel (%p585) target = $region12
    $region11: #{sci_mr_res_forward.1} parent=5 // pred_region
      %s589 = ssub.s32 %s30, 1
      // Predicated region
      $region13: #{sci_mr_res_forward.1} parent=11 // pred_check
        %p590 = pneg %p129
      $region14: #{sci_mr_res_forward.1} parent=11 // pred_check_branch
        %592 = sbr.rel (%p590) target = $region16
      $region15: #{sci_mr_res_forward.1} parent=11 // pred_region
        _
      $region16: #{sci_mr_res_forward.1} parent=11 // pred_fallthru
        _
      // Predicated region
      $region17: #{sci_mr_res_forward.1} parent=11 // pred_check
        %p593 = pneg %p150
      $region18: #{sci_mr_res_forward.1} parent=11 // pred_check_branch
        %595 = sbr.rel (%p593) target = $region20
      $region19: #{sci_mr_res_forward.1} parent=11 // pred_region
        _
      $region20: #{sci_mr_res_forward.1} parent=11 // pred_fallthru
        _
      // Predicated region
      $region21: #{sci_mr_res_forward.1} parent=11 // pred_check
        %p596 = pneg %p171
      $region22: #{sci_mr_res_forward.1} parent=11 // pred_check_branch
        %598 = sbr.rel (%p596) target = $region24
      $region23: #{sci_mr_res_forward.1} parent=11 // pred_region
        _
      $region24: #{sci_mr_res_forward.1} parent=11 // pred_fallthru
        _
      // Predicated region
      $region25: #{sci_mr_res_forward.1} parent=11 // pred_check
        %p599 = pneg %p192
      $region26: #{sci_mr_res_forward.1} parent=11 // pred_check_branch
        %601 = sbr.rel (%p599) target = $region28
      $region27: #{sci_mr_res_forward.1} parent=11 // pred_region
        _
      $region28: #{sci_mr_res_forward.1} parent=11 // pred_fallthru
        _
      // Predicated region
      $region29: #{sci_mr_res_forward.1} parent=11 // pred_check
        %p602 = pneg %p213
      $region30: #{sci_mr_res_forward.1} parent=11 // pred_check_branch
        %604 = sbr.rel (%p602) target = $region32
      $region31: #{sci_mr_res_forward.1} parent=11 // pred_region
        _
      $region32: #{sci_mr_res_forward.1} parent=11 // pred_fallthru
        _
      // Predicated region
      $region33: #{sci_mr_res_forward.1} parent=11 // pred_check
        %p605 = pneg %p234
      $region34: #{sci_mr_res_forward.1} parent=11 // pred_check_branch
        %607 = sbr.rel (%p605) target = $region36
      $region35: #{sci_mr_res_forward.1} parent=11 // pred_region
        _
      $region36: #{sci_mr_res_forward.1} parent=11 // pred_fallthru
        _
      // Predicated region
      $region37: #{sci_mr_res_forward.1} parent=11 // pred_check
        %p608 = pneg %p255
      $region38: #{sci_mr_res_forward.1} parent=11 // pred_check_branch
        %610 = sbr.rel (%p608) target = $region40
      $region39: #{sci_mr_res_forward.1} parent=11 // pred_region
        _
      $region40: #{sci_mr_res_forward.1} parent=11 // pred_fallthru
        _
      // Predicated region
      $region41: #{sci_mr_res_forward.1} parent=11 // pred_check
        %p611 = pneg %p276
      $region42: #{sci_mr_res_forward.1} parent=11 // pred_check_branch
        %613 = sbr.rel (%p611) target = $region44
      $region43: #{sci_mr_res_forward.1} parent=11 // pred_region
        _
      $region44: #{sci_mr_res_forward.1} parent=11 // pred_fallthru
        _
      // Predicated region
      $region45: #{sci_mr_res_forward.1} parent=11 // pred_check
        %p614 = pneg %p297
      $region46: #{sci_mr_res_forward.1} parent=11 // pred_check_branch
        %616 = sbr.rel (%p614) target = $region48
      $region47: #{sci_mr_res_forward.1} parent=11 // pred_region
        _
      $region48: #{sci_mr_res_forward.1} parent=11 // pred_fallthru
        _
      // Predicated region
      $region49: #{sci_mr_res_forward.1} parent=11 // pred_check
        %p617 = pneg %p318
      $region50: #{sci_mr_res_forward.1} parent=11 // pred_check_branch
        %619 = sbr.rel (%p617) target = $region52
      $region51: #{sci_mr_res_forward.1} parent=11 // pred_region
        _
      $region52: #{sci_mr_res_forward.1} parent=11 // pred_fallthru
        _
      // Predicated region
      $region53: #{sci_mr_res_forward.1} parent=11 // pred_check
        %p620 = pneg %p339
      $region54: #{sci_mr_res_forward.1} parent=11 // pred_check_branch
        %622 = sbr.rel (%p620) target = $region56
      $region55: #{sci_mr_res_forward.1} parent=11 // pred_region
        _
      $region56: #{sci_mr_res_forward.1} parent=11 // pred_fallthru
        _
      // Predicated region
      $region57: #{sci_mr_res_forward.1} parent=11 // pred_check
        %p623 = pneg %p360
      $region58: #{sci_mr_res_forward.1} parent=11 // pred_check_branch
        %625 = sbr.rel (%p623) target = $region60
      $region59: #{sci_mr_res_forward.1} parent=11 // pred_region
        _
      $region60: #{sci_mr_res_forward.1} parent=11 // pred_fallthru
        _
      // Predicated region
      $region61: #{sci_mr_res_forward.1} parent=11 // pred_check
        %p626 = pneg %p381
      $region62: #{sci_mr_res_forward.1} parent=11 // pred_check_branch
        %628 = sbr.rel (%p626) target = $region64
      $region63: #{sci_mr_res_forward.1} parent=11 // pred_region
        _
      $region64: #{sci_mr_res_forward.1} parent=11 // pred_fallthru
        _
      // Predicated region
      $region65: #{sci_mr_res_forward.1} parent=11 // pred_check
        %p629 = pneg %p402
      $region66: #{sci_mr_res_forward.1} parent=11 // pred_check_branch
        %631 = sbr.rel (%p629) target = $region68
      $region67: #{sci_mr_res_forward.1} parent=11 // pred_region
        _
      $region68: #{sci_mr_res_forward.1} parent=11 // pred_fallthru
        _
      // Predicated region
      $region69: #{sci_mr_res_forward.1} parent=11 // pred_check
        %p632 = pneg %p423
      $region70: #{sci_mr_res_forward.1} parent=11 // pred_check_branch
        %634 = sbr.rel (%p632) target = $region72
      $region71: #{sci_mr_res_forward.1} parent=11 // pred_region
        _
      $region72: #{sci_mr_res_forward.1} parent=11 // pred_fallthru
        _
      // Predicated region
      $region73: #{sci_mr_res_forward.1} parent=11 // pred_check
        %p635 = pneg %p444
      $region74: #{sci_mr_res_forward.1} parent=11 // pred_check_branch
        %637 = sbr.rel (%p635) target = $region76
      $region75: #{sci_mr_res_forward.1} parent=11 // pred_region
        _
      $region76: #{sci_mr_res_forward.1} parent=11 // pred_fallthru
        _
      // Predicated region
      $region77: #{sci_mr_res_forward.1} parent=11 // pred_check
        %p638 = pneg %p465
      $region78: #{sci_mr_res_forward.1} parent=11 // pred_check_branch
        %640 = sbr.rel (%p638) target = $region80
      $region79: #{sci_mr_res_forward.1} parent=11 // pred_region
        _
      $region80: #{sci_mr_res_forward.1} parent=11 // pred_fallthru
        _
      // Predicated region
      $region81: #{sci_mr_res_forward.1} parent=11 // pred_check
        %p641 = pneg %p486
      $region82: #{sci_mr_res_forward.1} parent=11 // pred_check_branch
        %643 = sbr.rel (%p641) target = $region84
      $region83: #{sci_mr_res_forward.1} parent=11 // pred_region
        _
      $region84: #{sci_mr_res_forward.1} parent=11 // pred_fallthru
        _
      // Predicated region
      $region85: #{sci_mr_res_forward.1} parent=11 // pred_check
        %p644 = pneg %p507
      $region86: #{sci_mr_res_forward.1} parent=11 // pred_check_branch
        %646 = sbr.rel (%p644) target = $region88
      $region87: #{sci_mr_res_forward.1} parent=11 // pred_region
        _
      $region88: #{sci_mr_res_forward.1} parent=11 // pred_fallthru
        _
      // Predicated region
      $region89: #{sci_mr_res_forward.1} parent=11 // pred_check
        %p647 = pneg %p528
      $region90: #{sci_mr_res_forward.1} parent=11 // pred_check_branch
        %649 = sbr.rel (%p647) target = $region92
      $region91: #{sci_mr_res_forward.1} parent=11 // pred_region
        _
      $region92: #{sci_mr_res_forward.1} parent=11 // pred_fallthru
        _
      // Predicated region
      $region93: #{sci_mr_res_forward.1} parent=11 // pred_check
        %p650 = pneg %p549
      $region94: #{sci_mr_res_forward.1} parent=11 // pred_check_branch
        %652 = sbr.rel (%p650) target = $region96
      $region95: #{sci_mr_res_forward.1} parent=11 // pred_region
        _
      $region96: #{sci_mr_res_forward.1} parent=11 // pred_fallthru
        _
    $region12: #{sci_mr_res_forward.1} parent=5 // pred_fallthru
      _
    %p653 = scmp.lt.s32.totalorder %s30, 2
    // Predicated region
    $region97: #{sci_mr_res_forward.1} parent=5 // pred_check
      %p654 = pneg %p653
    $region98: #{sci_mr_res_forward.1} parent=5 // pred_check_branch
      %656 = sbr.rel (%p654) target = $region100
    $region99: #{sci_mr_res_forward.1} parent=5 // pred_region
      // Predicated region
      $region101: #{sci_mr_res_forward.1} parent=99 // pred_check
        %p657 = pneg %p50
      $region102: #{sci_mr_res_forward.1} parent=99 // pred_check_branch
        %659 = sbr.rel (%p657) target = $region104
      $region103: #{sci_mr_res_forward.1} parent=99 // pred_region
        %p660 = scmp.lt.s32.totalorder %s30, 1
        %s661 = scalar_select %p660, %s30, 1
        %s662 = smul.addr %s661, 5
        %s663 = smul.addr %s662, 8
        %s664 = scalar_lea.vmem %s0, %s663
      $region104: #{sci_mr_res_forward.1} parent=99 // pred_fallthru
        _
      // Predicated region
      $region105: #{sci_mr_res_forward.1} parent=99 // pred_check
        %p665 = pneg %p76
      $region106: #{sci_mr_res_forward.1} parent=99 // pred_check_branch
        %667 = sbr.rel (%p665) target = $region108
      $region107: #{sci_mr_res_forward.1} parent=99 // pred_region
        %p668 = scmp.lt.s32.totalorder %s30, 1
        %s669 = scalar_select %p668, %s30, 1
        %s670 = smul.addr %s669, 2
        %s671 = smul.addr %s670, 8
        %s672 = scalar_lea.vmem %s1, %s671
      $region108: #{sci_mr_res_forward.1} parent=99 // pred_fallthru
        _
      // Predicated region
      $region109: #{sci_mr_res_forward.1} parent=99 // pred_check
        %p673 = pneg %p102
      $region110: #{sci_mr_res_forward.1} parent=99 // pred_check_branch
        %675 = sbr.rel (%p673) target = $region112
      $region111: #{sci_mr_res_forward.1} parent=99 // pred_region
        %p676 = scmp.lt.s32.totalorder %s30, 1
        %s677 = scalar_select %p676, %s30, 1
        %s678 = smul.addr %s677, 2
        %s679 = smul.addr %s678, 8
        %s680 = scalar_lea.vmem %s2, %s679
      $region112: #{sci_mr_res_forward.1} parent=99 // pred_fallthru
        _
    $region100: #{sci_mr_res_forward.1} parent=5 // pred_fallthru
      _
    %p681 = scmp.le.s32.totalorder 1, %s30
    %p682 = scmp.lt.s32.totalorder %s30, 3
    %p683 = pnand %p681, %p682
    %p684 = pneg %p683
    // Predicated region
    $region113: #{sci_mr_res_forward.1} parent=5 // pred_check
      _
    $region114: #{sci_mr_res_forward.1} parent=5 // pred_check_branch
      %686 = sbr.rel (%p683) target = $region116
    $region115: #{sci_mr_res_forward.1} parent=5 // pred_region
      %s687 = ssub.s32 %s30, 1
      %p688 = scmp.lt.s32.totalorder %s35, 1
      %s689 = scalar_select %p688, %s35, 1
      %s690 = smul.addr %s689, 5
      %s691 = smul.addr %s690, 8
      %s692 = scalar_lea.vmem %s0, %s691
      %p693 = pneg %p56
      %p694 = pneg %p53
      %p695 = scmp.lt.s32.totalorder %s35, 1
      %s696 = scalar_select %p695, %s35, 1
      %s697 = smul.addr %s696, 2
      %s698 = smul.addr %s697, 8
      %s699 = scalar_lea.vmem %s1, %s698
      %p700 = pneg %p82
      %p701 = pneg %p79
      %p702 = scmp.lt.s32.totalorder %s35, 1
      %s703 = scalar_select %p702, %s35, 1
      %s704 = smul.addr %s703, 2
      %s705 = smul.addr %s704, 8
      %s706 = scalar_lea.vmem %s2, %s705
      %p707 = pneg %p108
      %p708 = pneg %p105
      %p709 = pneg %p129
      %p710 = pneg %p126
      %p711 = pneg %p150
      %p712 = pneg %p147
      %p713 = pneg %p171
      %p714 = pneg %p168
      %p715 = pneg %p192
      %p716 = pneg %p189
      %p717 = pneg %p213
      %p718 = pneg %p210
      %p719 = pneg %p234
      %p720 = pneg %p231
      %p721 = pneg %p255
      %p722 = pneg %p252
      %p723 = pneg %p276
      %p724 = pneg %p273
      %p725 = pneg %p297
      %p726 = pneg %p294
      %p727 = pneg %p318
      %p728 = pneg %p315
      %p729 = pneg %p339
      %p730 = pneg %p336
      %p731 = pneg %p360
      %p732 = pneg %p357
      %p733 = pneg %p381
      %p734 = pneg %p378
      %p735 = pneg %p402
      %p736 = pneg %p399
      %p737 = pneg %p423
      %p738 = pneg %p420
      %p739 = pneg %p444
      %p740 = pneg %p441
      %p741 = pneg %p465
      %p742 = pneg %p462
      %p743 = pneg %p486
      %p744 = pneg %p483
      %p745 = pneg %p507
      %p746 = pneg %p504
      %p747 = pneg %p528
      %p748 = pneg %p525
      %p749 = pneg %p549
      %p750 = pneg %p546
      %p751 = pneg %p575
      %p752 = pneg %p572
      %p753 = scmp.lt.s32.totalorder %s35, 1
      %s754 = scalar_select %p753, %s35, 1
      %s755 = smul.addr %s754, 2
      %s756 = smul.addr %s755, 4
      %s757 = scalar_lea.vmem %s24, %s756
      %p758 = scmp.lt.s32.totalorder %s35, 1
      %s759 = scalar_select %p758, %s35, 1
      %s760 = smul.addr %s759, 5
      %s761 = smul.addr %s760, 8
      %s762 = scalar_lea.vmem %s0, %s761
      %p763 = scmp.lt.s32.totalorder %s35, 1
      %s764 = scalar_select %p763, %s35, 1
      %s765 = smul.addr %s764, 2
      %s766 = smul.addr %s765, 8
      %s767 = scalar_lea.vmem %s1, %s766
      %p768 = scmp.lt.s32.totalorder %s35, 1
      %s769 = scalar_select %p768, %s35, 1
      %s770 = smul.addr %s769, 2
      %s771 = smul.addr %s770, 8
      %s772 = scalar_lea.vmem %s2, %s771
      %p773 = scmp.lt.s32.totalorder %s35, 1
      %s774 = scalar_select %p773, %s35, 1
      %s775 = smul.addr %s774, 2
      %s776 = smul.addr %s775, 4
      %s777 = scalar_lea.vmem %s24, %s776
      %v778 = vld [vmem:[%s762] sm:$0xff]
      %v779 = vld [vmem:[%s762 + $0x8] sm:$0xff]
      %v780 = vld [vmem:[%s762 + $0x10] sm:$0xff]
      %v781 = vld [vmem:[%s762 + $0x18] sm:$0xff]
      %v782 = vld [vmem:[%s762 + $0x20] sm:$0xff]
      %v783 = vld [vmem:[%s3] sm:$0x3]
      %v784 = vld [vmem:[%s4] sm:$0x3]
      %v785 = vld [vmem:[%s5] sm:$0xff]
      %v786 = vld [vmem:[%s5 + $0x8] sm:$0xff]
      %v787 = vld [vmem:[%s6] sm:$0xff]
      %v788 = vld [vmem:[%s6 + $0x8] sm:$0xff]
      %vm789 = vcmask 64512
      %v791 = vsel %vm789, %v778, 0
      %793 = vmatprep.subr.mxu0 %v788
      %794 = vmatpush1.msra.mxu0 %v787
      %795 = vmatprep.subr.mxu0 0.0
      %796 = vmatpush1.msra.mxu0 0.0
      %797 = vmatprep.subr.mxu0 0.0
      %798 = vmatpush1.msra.mxu0 0.0
      %799 = vmatprep.subr.mxu0 0.0
      %800 = vmatpush1.msra.mxu0 0.0
      %801 = vmatprep.subr.mxu0 0.0
      %802 = vmatpush1.msra.mxu0 0.0
      %803 = vmatprep.subr.mxu0 0.0
      %804 = vmatpush1.msra.mxu0 0.0
      %805 = vmatprep.subr.mxu0 0.0
      %806 = vmatpush1.msra.mxu0 0.0
      %807 = vmatprep.subr.mxu0 0.0
      %808 = vmatpush1.msra.mxu0 0.0
      %809 = vmatprep.subr.mxu0 0.0
      %810 = vmatpush1.msra.mxu0 0.0
      %811 = vmatprep.subr.mxu0 0.0
      %812 = vmatpush1.msra.mxu0 0.0
      %813 = vmatprep.subr.mxu0 0.0
      %814 = vmatpush1.msra.mxu0 0.0
      %815 = vmatprep.subr.mxu0 0.0
      %816 = vmatpush1.msra.mxu0 0.0
      %817 = vmatprep.subr.mxu0 0.0
      %818 = vmatpush1.msra.mxu0 0.0
      %819 = vmatprep.subr.mxu0 0.0
      %820 = vmatpush1.msra.mxu0 0.0
      %821 = vmatprep.subr.mxu0 0.0
      %822 = vmatpush1.msra.mxu0 0.0
      %823 = vmatprep.subr.mxu0 0.0
      %824 = vmatpush1.msra.mxu0 0.0
      %825 = vmatprep.subr.mxu0 0.0
      %826 = vmatpush1.msra.mxu0 0.0
      %827 = vmatprep.subr.mxu0 0.0
      %828 = vmatpush1.msra.mxu0 0.0
      %829 = vmatprep.subr.mxu0 0.0
      %830 = vmatpush1.msra.mxu0 0.0
      %831 = vmatprep.subr.mxu0 0.0
      %832 = vmatpush1.msra.mxu0 0.0
      %833 = vmatprep.subr.mxu0 0.0
      %834 = vmatpush1.msra.mxu0 0.0
      %835 = vmatprep.subr.mxu0 0.0
      %836 = vmatpush1.msra.mxu0 0.0
      %837 = vmatprep.subr.mxu0 0.0
      %838 = vmatpush1.msra.mxu0 0.0
      %839 = vmatprep.subr.mxu0 0.0
      %840 = vmatpush1.msra.mxu0 0.0
      %841 = vmatprep.subr.mxu0 0.0
      %842 = vmatpush1.msra.mxu0 0.0
      %843 = vmatprep.subr.mxu0 0.0
      %844 = vmatpush1.msra.mxu0 0.0
      %845 = vmatprep.subr.mxu0 0.0
      %846 = vmatpush1.msra.mxu0 0.0
      %847 = vmatprep.subr.mxu0 0.0
      %848 = vmatpush1.msra.mxu0 0.0
      %849 = vmatprep.subr.mxu0 0.0
      %850 = vmatpush1.msra.mxu0 0.0
      %851 = vmatprep.subr.mxu0 0.0
      %852 = vmatpush1.msra.mxu0 0.0
      %853 = vmatprep.subr.mxu0 0.0
      %854 = vmatpush1.msra.mxu0 0.0
      %855 = vmatprep.subr.mxu0 0.0
      %856 = vmatpush1.msra.mxu0 0.0
      %857 = vmatprep.mubr.f32.mxu0 0.0
      %858 = vmatmul.mubr.f32.gmra.mrb[0].mxu0 %v791
      %v859 = vpop.f32.mrb[0].mxu0
      %v860 = vadd.f32 0.0, %v859
      %v861 = vpop.f32.mrb[0].mxu0
      %v862 = vadd.f32 0.0, %v861
      %863 = vdwg.mxu0
      %v865 = vsel %vm789, %v779, 0
      %867 = vmatprep.subr.mxu0 %v786
      %868 = vmatpush1.msra.mxu0 %v785
      %869 = vmatprep.subr.mxu0 0.0
      %870 = vmatpush1.msra.mxu0 0.0
      %871 = vmatprep.subr.mxu0 0.0
      %872 = vmatpush1.msra.mxu0 0.0
      %873 = vmatprep.subr.mxu0 0.0
      %874 = vmatpush1.msra.mxu0 0.0
      %875 = vmatprep.subr.mxu0 0.0
      %876 = vmatpush1.msra.mxu0 0.0
      %877 = vmatprep.subr.mxu0 0.0
      %878 = vmatpush1.msra.mxu0 0.0
      %879 = vmatprep.subr.mxu0 0.0
      %880 = vmatpush1.msra.mxu0 0.0
      %881 = vmatprep.subr.mxu0 0.0
      %882 = vmatpush1.msra.mxu0 0.0
      %883 = vmatprep.subr.mxu0 0.0
      %884 = vmatpush1.msra.mxu0 0.0
      %885 = vmatprep.subr.mxu0 0.0
      %886 = vmatpush1.msra.mxu0 0.0
      %887 = vmatprep.subr.mxu0 0.0
      %888 = vmatpush1.msra.mxu0 0.0
      %889 = vmatprep.subr.mxu0 0.0
      %890 = vmatpush1.msra.mxu0 0.0
      %891 = vmatprep.subr.mxu0 0.0
      %892 = vmatpush1.msra.mxu0 0.0
      %893 = vmatprep.subr.mxu0 0.0
      %894 = vmatpush1.msra.mxu0 0.0
      %895 = vmatprep.subr.mxu0 0.0
      %896 = vmatpush1.msra.mxu0 0.0
      %897 = vmatprep.subr.mxu0 0.0
      %898 = vmatpush1.msra.mxu0 0.0
      %899 = vmatprep.subr.mxu0 0.0
      %900 = vmatpush1.msra.mxu0 0.0
      %901 = vmatprep.subr.mxu0 0.0
      %902 = vmatpush1.msra.mxu0 0.0
      %903 = vmatprep.subr.mxu0 0.0
      %904 = vmatpush1.msra.mxu0 0.0
      %905 = vmatprep.subr.mxu0 0.0
      %906 = vmatpush1.msra.mxu0 0.0
      %907 = vmatprep.subr.mxu0 0.0
      %908 = vmatpush1.msra.mxu0 0.0
      %909 = vmatprep.subr.mxu0 0.0
      %910 = vmatpush1.msra.mxu0 0.0
      %911 = vmatprep.subr.mxu0 0.0
      %912 = vmatpush1.msra.mxu0 0.0
      %913 = vmatprep.subr.mxu0 0.0
      %914 = vmatpush1.msra.mxu0 0.0
      %915 = vmatprep.subr.mxu0 0.0
      %916 = vmatpush1.msra.mxu0 0.0
      %917 = vmatprep.subr.mxu0 0.0
      %918 = vmatpush1.msra.mxu0 0.0
      %919 = vmatprep.subr.mxu0 0.0
      %920 = vmatpush1.msra.mxu0 0.0
      %921 = vmatprep.subr.mxu0 0.0
      %922 = vmatpush1.msra.mxu0 0.0
      %923 = vmatprep.subr.mxu0 0.0
      %924 = vmatpush1.msra.mxu0 0.0
      %925 = vmatprep.subr.mxu0 0.0
      %926 = vmatpush1.msra.mxu0 0.0
      %927 = vmatprep.subr.mxu0 0.0
      %928 = vmatpush1.msra.mxu0 0.0
      %929 = vmatprep.subr.mxu0 0.0
      %930 = vmatpush1.msra.mxu0 0.0
      %931 = vmatprep.mubr.f32.mxu0 0.0
      %932 = vmatmul.mubr.f32.gmra.mrb[0].mxu0 %v865
      %v933 = vpop.f32.mrb[0].mxu0
      %v934 = vadd.f32 0.0, %v933
      %v935 = vpop.f32.mrb[0].mxu0
      %v936 = vadd.f32 0.0, %v935
      %937 = vdwg.mxu0
      %v939 = vsel %vm789, %v780, 0
      %v942 = vsel %vm789, %v781, 0
      %944 = vmatprep.subr.mxu0 %v786
      %945 = vmatpush1.msra.mxu0 %v785
      %946 = vmatprep.subr.mxu0 0.0
      %947 = vmatpush1.msra.mxu0 0.0
      %948 = vmatprep.subr.mxu0 0.0
      %949 = vmatpush1.msra.mxu0 0.0
      %950 = vmatprep.subr.mxu0 0.0
      %951 = vmatpush1.msra.mxu0 0.0
      %952 = vmatprep.subr.mxu0 0.0
      %953 = vmatpush1.msra.mxu0 0.0
      %954 = vmatprep.subr.mxu0 0.0
      %955 = vmatpush1.msra.mxu0 0.0
      %956 = vmatprep.subr.mxu0 0.0
      %957 = vmatpush1.msra.mxu0 0.0
      %958 = vmatprep.subr.mxu0 0.0
      %959 = vmatpush1.msra.mxu0 0.0
      %960 = vmatprep.subr.mxu0 0.0
      %961 = vmatpush1.msra.mxu0 0.0
      %962 = vmatprep.subr.mxu0 0.0
      %963 = vmatpush1.msra.mxu0 0.0
      %964 = vmatprep.subr.mxu0 0.0
      %965 = vmatpush1.msra.mxu0 0.0
      %966 = vmatprep.subr.mxu0 0.0
      %967 = vmatpush1.msra.mxu0 0.0
      %968 = vmatprep.subr.mxu0 0.0
      %969 = vmatpush1.msra.mxu0 0.0
      %970 = vmatprep.subr.mxu0 0.0
      %971 = vmatpush1.msra.mxu0 0.0
      %972 = vmatprep.subr.mxu0 0.0
      %973 = vmatpush1.msra.mxu0 0.0
      %974 = vmatprep.subr.mxu0 0.0
      %975 = vmatpush1.msra.mxu0 0.0
      %976 = vmatprep.subr.mxu0 0.0
      %977 = vmatpush1.msra.mxu0 0.0
      %978 = vmatprep.subr.mxu0 0.0
      %979 = vmatpush1.msra.mxu0 0.0
      %980 = vmatprep.subr.mxu0 0.0
      %981 = vmatpush1.msra.mxu0 0.0
      %982 = vmatprep.subr.mxu0 0.0
      %983 = vmatpush1.msra.mxu0 0.0
      %984 = vmatprep.subr.mxu0 0.0
      %985 = vmatpush1.msra.mxu0 0.0
      %986 = vmatprep.subr.mxu0 0.0
      %987 = vmatpush1.msra.mxu0 0.0
      %988 = vmatprep.subr.mxu0 0.0
      %989 = vmatpush1.msra.mxu0 0.0
      %990 = vmatprep.subr.mxu0 0.0
      %991 = vmatpush1.msra.mxu0 0.0
      %992 = vmatprep.subr.mxu0 0.0
      %993 = vmatpush1.msra.mxu0 0.0
      %994 = vmatprep.subr.mxu0 0.0
      %995 = vmatpush1.msra.mxu0 0.0
      %996 = vmatprep.subr.mxu0 0.0
      %997 = vmatpush1.msra.mxu0 0.0
      %998 = vmatprep.subr.mxu0 0.0
      %999 = vmatpush1.msra.mxu0 0.0
      %1000 = vmatprep.subr.mxu0 0.0
      %1001 = vmatpush1.msra.mxu0 0.0
      %1002 = vmatprep.subr.mxu0 0.0
      %1003 = vmatpush1.msra.mxu0 0.0
      %1004 = vmatprep.subr.mxu0 0.0
      %1005 = vmatpush1.msra.mxu0 0.0
      %1006 = vmatprep.subr.mxu0 0.0
      %1007 = vmatpush1.msra.mxu0 0.0
      %1008 = vmatprep.mubr.f32.mxu0 0.0
      %1009 = vmatmul.mubr.f32.gmra.mrb[0].mxu0 %v939
      %v1010 = vpop.f32.mrb[0].mxu0
      %v1011 = vadd.f32 0.0, %v1010
      %v1012 = vpop.f32.mrb[0].mxu0
      %v1013 = vadd.f32 0.0, %v1012
      %1014 = vmatprep.mubr.f32.mxu0 0.0
      %1015 = vmatmul.mubr.f32.gmra.mrb[0].mxu0 %v942
      %v1016 = vpop.f32.mrb[0].mxu0
      %v1017 = vadd.f32 0.0, %v1016
      %v1018 = vpop.f32.mrb[0].mxu0
      %v1019 = vadd.f32 0.0, %v1018
      %1020 = vdwg.mxu0
      %v1022 = vsel %vm789, %v782, 0
      %1024 = vmatprep.subr.mxu0 %v786
      %1025 = vmatpush1.msra.mxu0 %v785
      %1026 = vmatprep.subr.mxu0 0.0
      %1027 = vmatpush1.msra.mxu0 0.0
      %1028 = vmatprep.subr.mxu0 0.0
      %1029 = vmatpush1.msra.mxu0 0.0
      %1030 = vmatprep.subr.mxu0 0.0
      %1031 = vmatpush1.msra.mxu0 0.0
      %1032 = vmatprep.subr.mxu0 0.0
      %1033 = vmatpush1.msra.mxu0 0.0
      %1034 = vmatprep.subr.mxu0 0.0
      %1035 = vmatpush1.msra.mxu0 0.0
      %1036 = vmatprep.subr.mxu0 0.0
      %1037 = vmatpush1.msra.mxu0 0.0
      %1038 = vmatprep.subr.mxu0 0.0
      %1039 = vmatpush1.msra.mxu0 0.0
      %1040 = vmatprep.subr.mxu0 0.0
      %1041 = vmatpush1.msra.mxu0 0.0
      %1042 = vmatprep.subr.mxu0 0.0
      %1043 = vmatpush1.msra.mxu0 0.0
      %1044 = vmatprep.subr.mxu0 0.0
      %1045 = vmatpush1.msra.mxu0 0.0
      %1046 = vmatprep.subr.mxu0 0.0
      %1047 = vmatpush1.msra.mxu0 0.0
      %1048 = vmatprep.subr.mxu0 0.0
      %1049 = vmatpush1.msra.mxu0 0.0
      %1050 = vmatprep.subr.mxu0 0.0
      %1051 = vmatpush1.msra.mxu0 0.0
      %1052 = vmatprep.subr.mxu0 0.0
      %1053 = vmatpush1.msra.mxu0 0.0
      %1054 = vmatprep.subr.mxu0 0.0
      %1055 = vmatpush1.msra.mxu0 0.0
      %1056 = vmatprep.subr.mxu0 0.0
      %1057 = vmatpush1.msra.mxu0 0.0
      %1058 = vmatprep.subr.mxu0 0.0
      %1059 = vmatpush1.msra.mxu0 0.0
      %1060 = vmatprep.subr.mxu0 0.0
      %1061 = vmatpush1.msra.mxu0 0.0
      %1062 = vmatprep.subr.mxu0 0.0
      %1063 = vmatpush1.msra.mxu0 0.0
      %1064 = vmatprep.subr.mxu0 0.0
      %1065 = vmatpush1.msra.mxu0 0.0
      %1066 = vmatprep.subr.mxu0 0.0
      %1067 = vmatpush1.msra.mxu0 0.0
      %1068 = vmatprep.subr.mxu0 0.0
      %1069 = vmatpush1.msra.mxu0 0.0
      %1070 = vmatprep.subr.mxu0 0.0
      %1071 = vmatpush1.msra.mxu0 0.0
      %1072 = vmatprep.subr.mxu0 0.0
      %1073 = vmatpush1.msra.mxu0 0.0
      %1074 = vmatprep.subr.mxu0 0.0
      %1075 = vmatpush1.msra.mxu0 0.0
      %1076 = vmatprep.subr.mxu0 0.0
      %1077 = vmatpush1.msra.mxu0 0.0
      %1078 = vmatprep.subr.mxu0 0.0
      %1079 = vmatpush1.msra.mxu0 0.0
      %1080 = vmatprep.subr.mxu0 0.0
      %1081 = vmatpush1.msra.mxu0 0.0
      %1082 = vmatprep.subr.mxu0 0.0
      %1083 = vmatpush1.msra.mxu0 0.0
      %1084 = vmatprep.subr.mxu0 0.0
      %1085 = vmatpush1.msra.mxu0 0.0
      %1086 = vmatprep.subr.mxu0 0.0
      %1087 = vmatpush1.msra.mxu0 0.0
      %1088 = vmatprep.mubr.f32.mxu0 0.0
      %1089 = vmatmul.mubr.f32.gmra.mrb[0].mxu0 %v1022
      %v1090 = vpop.f32.mrb[0].mxu0
      %v1091 = vadd.f32 0.0, %v1090
      %v1092 = vpop.f32.mrb[0].mxu0
      %v1093 = vadd.f32 0.0, %v1092
      %1094 = vdwg.mxu0
      %v1095 = vld [vmem:[%s772] sm:$0xff]
      %v1096 = vld [vmem:[%s772 + $0x8] sm:$0xff]
      %v1097 = vld [vmem:[%s8] sm:$0xff]
      %v1098 = vld [vmem:[%s9] sm:$0xff]
      %v1099 = vld [vmem:[%s10] sm:$0xff]
      %v1100 = vld [vmem:[%s11] sm:$0xff]
      %v1102 = vlaneseq
      %v1103 = vshrl.u32 %v1102, 7
      %v1104 = vsub.s32 0, %v1103
      %v1105 = vrot.slane %v784, %v1104
      %v1106 = vlaneseq
      %v1107 = vshrl.u32 %v1106, 7
      %v1108 = vsub.s32 1, %v1107
      %v1109 = vrot.slane %v784, %v1108
      %v1112 = vmul.f32 %v1095, %v1105
      %v1113 = vmul.f32 %v1096, %v1109
      %1114 = vrot.lane.b32.xlu0 %v1112, 1
      %v1115 = vpop.permute.xlu0 %1114
      %1116 = vrot.lane.b32.xlu0 %v1113, 1
      %v1117 = vpop.permute.xlu0 %1116
      %v1118 = vlaneseq
      %v1119 = vand.u32 %v1118, 127
      %vm1120 = vcmp.lt.s32.totalorder %v1119, 1
      %v1121 = vsel %vm1120, %v1115, %v1117
      %v1122 = vsel %vm1120, %v1117, %v1115
      %1123 = vrot.lane.b32.xlu0 %v1112, 127
      %v1124 = vpop.permute.xlu0 %1123
      %1125 = vrot.lane.b32.xlu0 %v1113, 127
      %v1126 = vpop.permute.xlu0 %1125
      %vm1127 = vcmp.lt.s32.totalorder %v1119, 127
      %v1128 = vsel %vm1127, %v1124, %v1126
      %v1129 = vsel %vm1127, %v1126, %v1124
      %1131 = vset.pattern.permute.xlu0 0
      %1132 = vperm.xlu0 %1131, %v1098
      %v1133 = vpop.permute.xlu0 %1132
      %vm1135 = vcmask 195584
      %v1137 = vsel %vm1135, %v1097, 0
      %1139 = vmatprep.subr.mxu0 %v1121
      %1140 = vmatpush1.msra.mxu0 %v1122
      %1141 = vmatprep.subr.mxu0 %v1113
      %1142 = vmatpush1.msra.mxu0 %v1112
      %1143 = vmatprep.subr.mxu0 %v1129
      %1144 = vmatpush1.msra.mxu0 %v1128
      %1145 = vmatprep.subr.mxu0 0.0
      %1146 = vmatpush1.msra.mxu0 0.0
      %1147 = vmatprep.subr.mxu0 0.0
      %1148 = vmatpush1.msra.mxu0 0.0
      %1149 = vmatprep.subr.mxu0 0.0
      %1150 = vmatpush1.msra.mxu0 0.0
      %1151 = vmatprep.subr.mxu0 0.0
      %1152 = vmatpush1.msra.mxu0 0.0
      %1153 = vmatprep.subr.mxu0 0.0
      %1154 = vmatpush1.msra.mxu0 0.0
      %1155 = vmatprep.subr.mxu0 0.0
      %1156 = vmatpush1.msra.mxu0 0.0
      %1157 = vmatprep.subr.mxu0 0.0
      %1158 = vmatpush1.msra.mxu0 0.0
      %1159 = vmatprep.subr.mxu0 0.0
      %1160 = vmatpush1.msra.mxu0 0.0
      %1161 = vmatprep.subr.mxu0 0.0
      %1162 = vmatpush1.msra.mxu0 0.0
      %1163 = vmatprep.subr.mxu0 0.0
      %1164 = vmatpush1.msra.mxu0 0.0
      %1165 = vmatprep.subr.mxu0 0.0
      %1166 = vmatpush1.msra.mxu0 0.0
      %1167 = vmatprep.subr.mxu0 0.0
      %1168 = vmatpush1.msra.mxu0 0.0
      %1169 = vmatprep.subr.mxu0 0.0
      %1170 = vmatpush1.msra.mxu0 0.0
      %1171 = vmatprep.subr.mxu0 0.0
      %1172 = vmatpush1.msra.mxu0 0.0
      %1173 = vmatprep.subr.mxu0 0.0
      %1174 = vmatpush1.msra.mxu0 0.0
      %1175 = vmatprep.subr.mxu0 0.0
      %1176 = vmatpush1.msra.mxu0 0.0
      %1177 = vmatprep.subr.mxu0 0.0
      %1178 = vmatpush1.msra.mxu0 0.0
      %1179 = vmatprep.subr.mxu0 0.0
      %1180 = vmatpush1.msra.mxu0 0.0
      %1181 = vmatprep.subr.mxu0 0.0
      %1182 = vmatpush1.msra.mxu0 0.0
      %1183 = vmatprep.subr.mxu0 0.0
      %1184 = vmatpush1.msra.mxu0 0.0
      %1185 = vmatprep.subr.mxu0 0.0
      %1186 = vmatpush1.msra.mxu0 0.0
      %1187 = vmatprep.subr.mxu0 0.0
      %1188 = vmatpush1.msra.mxu0 0.0
      %1189 = vmatprep.subr.mxu0 0.0
      %1190 = vmatpush1.msra.mxu0 0.0
      %1191 = vmatprep.subr.mxu0 0.0
      %1192 = vmatpush1.msra.mxu0 0.0
      %1193 = vmatprep.subr.mxu0 0.0
      %1194 = vmatpush1.msra.mxu0 0.0
      %1195 = vmatprep.subr.mxu0 0.0
      %1196 = vmatpush1.msra.mxu0 0.0
      %1197 = vmatprep.subr.mxu0 0.0
      %1198 = vmatpush1.msra.mxu0 0.0
      %1199 = vmatprep.subr.mxu0 0.0
      %1200 = vmatpush1.msra.mxu0 0.0
      %1201 = vmatprep.subr.mxu0 0.0
      %1202 = vmatpush1.msra.mxu0 0.0
      %1203 = vmatprep.mubr.f32.mxu0 0.0
      %1204 = vmatmul.mubr.f32.gmra.mrb[0].mxu0 %v1137
      %v1205 = vpop.f32.mrb[0].mxu0
      %v1206 = vadd.f32 %v1133, %v1205
      %v1207 = vpop.f32.mrb[0].mxu0
      %v1208 = vadd.f32 %v1133, %v1207
      %1209 = vdwg.mxu0
      %vm1210 = vcmp.gt.f32.partialorder %v1206, 0.0
      %vm1211 = vcmp.gt.f32.partialorder %v1208, 0.0
      %v1212 = vmul.f32 %v1206, 0.1
      %v1213 = vmul.f32 %v1208, 0.1
      %v1214 = vsel %vm1210, %v1206, %v1212
      %v1215 = vsel %vm1211, %v1208, %v1213
      %v1216 = vadd.f32 %v1214, %v860
      %v1217 = vadd.f32 %v1215, %v862
      %v1218 = vmul.f32 %v1216, %v1105
      %v1219 = vmul.f32 %v1217, %v1109
      %1220 = vrot.lane.b32.xlu0 %v1218, 1
      %v1221 = vpop.permute.xlu0 %1220
      %1222 = vrot.lane.b32.xlu0 %v1219, 1
      %v1223 = vpop.permute.xlu0 %1222
      %v1224 = vsel %vm1120, %v1221, %v1223
      %v1225 = vsel %vm1120, %v1223, %v1221
      %1226 = vrot.lane.b32.xlu0 %v1218, 127
      %v1227 = vpop.permute.xlu0 %1226
      %1228 = vrot.lane.b32.xlu0 %v1219, 127
      %v1229 = vpop.permute.xlu0 %1228
      %v1230 = vsel %vm1127, %v1227, %v1229
      %v1231 = vsel %vm1127, %v1229, %v1227
      %1233 = vset.pattern.permute.xlu0 0
      %1234 = vperm.xlu0 %1233, %v1100
      %v1235 = vpop.permute.xlu0 %1234
      %v1238 = vsel %vm1135, %v1099, 0
      %1240 = vmatprep.subr.mxu0 %v1224
      %1241 = vmatpush1.msra.mxu0 %v1225
      %1242 = vmatprep.subr.mxu0 %v1219
      %1243 = vmatpush1.msra.mxu0 %v1218
      %1244 = vmatprep.subr.mxu0 %v1231
      %1245 = vmatpush1.msra.mxu0 %v1230
      %1246 = vmatprep.subr.mxu0 0.0
      %1247 = vmatpush1.msra.mxu0 0.0
      %1248 = vmatprep.subr.mxu0 0.0
      %1249 = vmatpush1.msra.mxu0 0.0
      %1250 = vmatprep.subr.mxu0 0.0
      %1251 = vmatpush1.msra.mxu0 0.0
      %1252 = vmatprep.subr.mxu0 0.0
      %1253 = vmatpush1.msra.mxu0 0.0
      %1254 = vmatprep.subr.mxu0 0.0
      %1255 = vmatpush1.msra.mxu0 0.0
      %1256 = vmatprep.subr.mxu0 0.0
      %1257 = vmatpush1.msra.mxu0 0.0
      %1258 = vmatprep.subr.mxu0 0.0
      %1259 = vmatpush1.msra.mxu0 0.0
      %1260 = vmatprep.subr.mxu0 0.0
      %1261 = vmatpush1.msra.mxu0 0.0
      %1262 = vmatprep.subr.mxu0 0.0
      %1263 = vmatpush1.msra.mxu0 0.0
      %1264 = vmatprep.subr.mxu0 0.0
      %1265 = vmatpush1.msra.mxu0 0.0
      %1266 = vmatprep.subr.mxu0 0.0
      %1267 = vmatpush1.msra.mxu0 0.0
      %1268 = vmatprep.subr.mxu0 0.0
      %1269 = vmatpush1.msra.mxu0 0.0
      %1270 = vmatprep.subr.mxu0 0.0
      %1271 = vmatpush1.msra.mxu0 0.0
      %1272 = vmatprep.subr.mxu0 0.0
      %1273 = vmatpush1.msra.mxu0 0.0
      %1274 = vmatprep.subr.mxu0 0.0
      %1275 = vmatpush1.msra.mxu0 0.0
      %1276 = vmatprep.subr.mxu0 0.0
      %1277 = vmatpush1.msra.mxu0 0.0
      %1278 = vmatprep.subr.mxu0 0.0
      %1279 = vmatpush1.msra.mxu0 0.0
      %1280 = vmatprep.subr.mxu0 0.0
      %1281 = vmatpush1.msra.mxu0 0.0
      %1282 = vmatprep.subr.mxu0 0.0
      %1283 = vmatpush1.msra.mxu0 0.0
      %1284 = vmatprep.subr.mxu0 0.0
      %1285 = vmatpush1.msra.mxu0 0.0
      %1286 = vmatprep.subr.mxu0 0.0
      %1287 = vmatpush1.msra.mxu0 0.0
      %1288 = vmatprep.subr.mxu0 0.0
      %1289 = vmatpush1.msra.mxu0 0.0
      %1290 = vmatprep.subr.mxu0 0.0
      %1291 = vmatpush1.msra.mxu0 0.0
      %1292 = vmatprep.subr.mxu0 0.0
      %1293 = vmatpush1.msra.mxu0 0.0
      %1294 = vmatprep.subr.mxu0 0.0
      %1295 = vmatpush1.msra.mxu0 0.0
      %1296 = vmatprep.subr.mxu0 0.0
      %1297 = vmatpush1.msra.mxu0 0.0
      %1298 = vmatprep.subr.mxu0 0.0
      %1299 = vmatpush1.msra.mxu0 0.0
      %1300 = vmatprep.subr.mxu0 0.0
      %1301 = vmatpush1.msra.mxu0 0.0
      %1302 = vmatprep.subr.mxu0 0.0
      %1303 = vmatpush1.msra.mxu0 0.0
      %1304 = vmatprep.mubr.f32.mxu0 0.0
      %1305 = vmatmul.mubr.f32.gmra.mrb[0].mxu0 %v1238
      %v1306 = vpop.f32.mrb[0].mxu0
      %v1307 = vadd.f32 %v1235, %v1306
      %v1308 = vpop.f32.mrb[0].mxu0
      %v1309 = vadd.f32 %v1235, %v1308
      %1310 = vdwg.mxu0
      %v1311 = vld [vmem:[%s7] sm:$0xff]
      %v1312 = vld [vmem:[%s7 + $0x8] sm:$0xff]
      %v1313 = vld [vmem:[%s7 + $0x10] sm:$0xff]
      %v1314 = vld [vmem:[%s7 + $0x18] sm:$0xff]
      %v1315 = vld [vmem:[%s7 + $0x20] sm:$0xff]
      %v1316 = vld [vmem:[%s7 + $0x28] sm:$0xff]
      %v1317 = vld [vmem:[%s7 + $0x30] sm:$0xff]
      %v1318 = vld [vmem:[%s7 + $0x38] sm:$0xff]
      %v1319 = vld [vmem:[%s7 + $0x40] sm:$0xff]
      %v1320 = vld [vmem:[%s7 + $0x48] sm:$0xff]
      %v1321 = vld [vmem:[%s7 + $0x50] sm:$0xff]
      %v1322 = vld [vmem:[%s7 + $0x58] sm:$0xff]
      %v1323 = vld [vmem:[%s7 + $0x60] sm:$0xff]
      %v1324 = vld [vmem:[%s7 + $0x68] sm:$0xff]
      %v1325 = vld [vmem:[%s7 + $0x70] sm:$0xff]
      %v1326 = vld [vmem:[%s7 + $0x78] sm:$0xff]
      %1327 = vmatprep.subr.mxu0 0.0
      %1328 = vmatpush1.msra.mxu0 %v1311
      %1329 = vmatprep.subr.mxu0 0.0
      %1330 = vmatpush1.msra.mxu0 %v1312
      %1331 = vmatprep.subr.mxu0 0.0
      %1332 = vmatpush1.msra.mxu0 %v1313
      %1333 = vmatprep.subr.mxu0 0.0
      %1334 = vmatpush1.msra.mxu0 %v1314
      %1335 = vmatprep.subr.mxu0 0.0
      %1336 = vmatpush1.msra.mxu0 %v1315
      %1337 = vmatprep.subr.mxu0 0.0
      %1338 = vmatpush1.msra.mxu0 %v1316
      %1339 = vmatprep.subr.mxu0 0.0
      %1340 = vmatpush1.msra.mxu0 %v1317
      %1341 = vmatprep.subr.mxu0 0.0
      %1342 = vmatpush1.msra.mxu0 %v1318
      %1343 = vmatprep.subr.mxu0 0.0
      %1344 = vmatpush1.msra.mxu0 %v1319
      %1345 = vmatprep.subr.mxu0 0.0
      %1346 = vmatpush1.msra.mxu0 %v1320
      %1347 = vmatprep.subr.mxu0 0.0
      %1348 = vmatpush1.msra.mxu0 %v1321
      %1349 = vmatprep.subr.mxu0 0.0
      %1350 = vmatpush1.msra.mxu0 %v1322
      %1351 = vmatprep.subr.mxu0 0.0
      %1352 = vmatpush1.msra.mxu0 %v1323
      %1353 = vmatprep.subr.mxu0 0.0
      %1354 = vmatpush1.msra.mxu0 %v1324
      %1355 = vmatprep.subr.mxu0 0.0
      %1356 = vmatpush1.msra.mxu0 %v1325
      %1357 = vmatprep.subr.mxu0 0.0
      %1358 = vmatpush1.msra.mxu0 %v1326
      %1359 = vmatprep.subr.mxu0 0.0
      %1360 = vmatpush1.msra.mxu0 0.0
      %1361 = vmatprep.subr.mxu0 0.0
      %1362 = vmatpush1.msra.mxu0 0.0
      %1363 = vmatprep.subr.mxu0 0.0
      %1364 = vmatpush1.msra.mxu0 0.0
      %1365 = vmatprep.subr.mxu0 0.0
      %1366 = vmatpush1.msra.mxu0 0.0
      %1367 = vmatprep.subr.mxu0 0.0
      %1368 = vmatpush1.msra.mxu0 0.0
      %1369 = vmatprep.subr.mxu0 0.0
      %1370 = vmatpush1.msra.mxu0 0.0
      %1371 = vmatprep.subr.mxu0 0.0
      %1372 = vmatpush1.msra.mxu0 0.0
      %1373 = vmatprep.subr.mxu0 0.0
      %1374 = vmatpush1.msra.mxu0 0.0
      %1375 = vmatprep.subr.mxu0 0.0
      %1376 = vmatpush1.msra.mxu0 0.0
      %1377 = vmatprep.subr.mxu0 0.0
      %1378 = vmatpush1.msra.mxu0 0.0
      %1379 = vmatprep.subr.mxu0 0.0
      %1380 = vmatpush1.msra.mxu0 0.0
      %1381 = vmatprep.subr.mxu0 0.0
      %1382 = vmatpush1.msra.mxu0 0.0
      %1383 = vmatprep.subr.mxu0 0.0
      %1384 = vmatpush1.msra.mxu0 0.0
      %1385 = vmatprep.subr.mxu0 0.0
      %1386 = vmatpush1.msra.mxu0 0.0
      %1387 = vmatprep.subr.mxu0 0.0
      %1388 = vmatpush1.msra.mxu0 0.0
      %1389 = vmatprep.subr.mxu0 0.0
      %1390 = vmatpush1.msra.mxu0 0.0
      %1391 = vmatprep.mubr.f32.mxu0 0.0
      %1392 = vmatmul.mubr.f32.gmra.mrb[0].mxu0 %v1307
      %v1393 = vpop.f32.mrb[0].mxu0
      %v1394 = vadd.f32 0.0, %v1393
      %v1395 = vpop.f32.mrb[0].mxu0
      %1396 = vdwg.mxu0
      %s1397 = scalar_lea.vmem %s7, 128
      %v1398 = vld [vmem:[%s1397] sm:$0xff]
      %v1399 = vld [vmem:[%s1397 + $0x8] sm:$0xff]
      %v1400 = vld [vmem:[%s1397 + $0x10] sm:$0xff]
      %v1401 = vld [vmem:[%s1397 + $0x18] sm:$0xff]
      %v1402 = vld [vmem:[%s1397 + $0x20] sm:$0xff]
      %v1403 = vld [vmem:[%s1397 + $0x28] sm:$0xff]
      %v1404 = vld [vmem:[%s1397 + $0x30] sm:$0xff]
      %v1405 = vld [vmem:[%s1397 + $0x38] sm:$0xff]
      %v1406 = vld [vmem:[%s1397 + $0x40] sm:$0xff]
      %v1407 = vld [vmem:[%s1397 + $0x48] sm:$0xff]
      %v1408 = vld [vmem:[%s1397 + $0x50] sm:$0xff]
      %v1409 = vld [vmem:[%s1397 + $0x58] sm:$0xff]
      %v1410 = vld [vmem:[%s1397 + $0x60] sm:$0xff]
      %v1411 = vld [vmem:[%s1397 + $0x68] sm:$0xff]
      %v1412 = vld [vmem:[%s1397 + $0x70] sm:$0xff]
      %v1413 = vld [vmem:[%s1397 + $0x78] sm:$0xff]
      %1414 = vmatprep.subr.mxu0 0.0
      %1415 = vmatpush1.msra.mxu0 %v1398
      %1416 = vmatprep.subr.mxu0 0.0
      %1417 = vmatpush1.msra.mxu0 %v1399
      %1418 = vmatprep.subr.mxu0 0.0
      %1419 = vmatpush1.msra.mxu0 %v1400
      %1420 = vmatprep.subr.mxu0 0.0
      %1421 = vmatpush1.msra.mxu0 %v1401
      %1422 = vmatprep.subr.mxu0 0.0
      %1423 = vmatpush1.msra.mxu0 %v1402
      %1424 = vmatprep.subr.mxu0 0.0
      %1425 = vmatpush1.msra.mxu0 %v1403
      %1426 = vmatprep.subr.mxu0 0.0
      %1427 = vmatpush1.msra.mxu0 %v1404
      %1428 = vmatprep.subr.mxu0 0.0
      %1429 = vmatpush1.msra.mxu0 %v1405
      %1430 = vmatprep.subr.mxu0 0.0
      %1431 = vmatpush1.msra.mxu0 %v1406
      %1432 = vmatprep.subr.mxu0 0.0
      %1433 = vmatpush1.msra.mxu0 %v1407
      %1434 = vmatprep.subr.mxu0 0.0
      %1435 = vmatpush1.msra.mxu0 %v1408
      %1436 = vmatprep.subr.mxu0 0.0
      %1437 = vmatpush1.msra.mxu0 %v1409
      %1438 = vmatprep.subr.mxu0 0.0
      %1439 = vmatpush1.msra.mxu0 %v1410
      %1440 = vmatprep.subr.mxu0 0.0
      %1441 = vmatpush1.msra.mxu0 %v1411
      %1442 = vmatprep.subr.mxu0 0.0
      %1443 = vmatpush1.msra.mxu0 %v1412
      %1444 = vmatprep.subr.mxu0 0.0
      %1445 = vmatpush1.msra.mxu0 %v1413
      %1446 = vmatprep.subr.mxu0 0.0
      %1447 = vmatpush1.msra.mxu0 0.0
      %1448 = vmatprep.subr.mxu0 0.0
      %1449 = vmatpush1.msra.mxu0 0.0
      %1450 = vmatprep.subr.mxu0 0.0
      %1451 = vmatpush1.msra.mxu0 0.0
      %1452 = vmatprep.subr.mxu0 0.0
      %1453 = vmatpush1.msra.mxu0 0.0
      %1454 = vmatprep.subr.mxu0 0.0
      %1455 = vmatpush1.msra.mxu0 0.0
      %1456 = vmatprep.subr.mxu0 0.0
      %1457 = vmatpush1.msra.mxu0 0.0
      %1458 = vmatprep.subr.mxu0 0.0
      %1459 = vmatpush1.msra.mxu0 0.0
      %1460 = vmatprep.subr.mxu0 0.0
      %1461 = vmatpush1.msra.mxu0 0.0
      %1462 = vmatprep.subr.mxu0 0.0
      %1463 = vmatpush1.msra.mxu0 0.0
      %1464 = vmatprep.subr.mxu0 0.0
      %1465 = vmatpush1.msra.mxu0 0.0
      %1466 = vmatprep.subr.mxu0 0.0
      %1467 = vmatpush1.msra.mxu0 0.0
      %1468 = vmatprep.subr.mxu0 0.0
      %1469 = vmatpush1.msra.mxu0 0.0
      %1470 = vmatprep.subr.mxu0 0.0
      %1471 = vmatpush1.msra.mxu0 0.0
      %1472 = vmatprep.subr.mxu0 0.0
      %1473 = vmatpush1.msra.mxu0 0.0
      %1474 = vmatprep.subr.mxu0 0.0
      %1475 = vmatpush1.msra.mxu0 0.0
      %1476 = vmatprep.subr.mxu0 0.0
      %1477 = vmatpush1.msra.mxu0 0.0
      %1478 = vmatprep.mubr.f32.mxu0 0.0
      %1479 = vmatmul.mubr.f32.gmra.mrb[0].mxu0 %v1309
      %v1480 = vpop.f32.mrb[0].mxu0
      %v1481 = vadd.f32 0.0, %v1480
      %v1482 = vpop.f32.mrb[0].mxu0
      %1483 = vdwg.mxu0
      %v1484 = vld [vmem:[%s767] sm:$0xff]
      %v1485 = vld [vmem:[%s767 + $0x8] sm:$0xff]
      %v1486 = vld [vmem:[%s12] sm:$0xff]
      %v1487 = vld [vmem:[%s13] sm:$0xff]
      %v1488 = vld [vmem:[%s14] sm:$0xff]
      %v1489 = vld [vmem:[%s15] sm:$0xff]
      %v1491 = vlaneseq
      %v1492 = vshrl.u32 %v1491, 7
      %v1493 = vsub.s32 0, %v1492
      %v1494 = vrot.slane %v783, %v1493
      %v1495 = vlaneseq
      %v1496 = vshrl.u32 %v1495, 7
      %v1497 = vsub.s32 1, %v1496
      %v1498 = vrot.slane %v783, %v1497
      %v1501 = vmul.f32 %v1484, %v1494
      %v1502 = vmul.f32 %v1485, %v1498
      %1503 = vrot.lane.b32.xlu0 %v1501, 1
      %v1504 = vpop.permute.xlu0 %1503
      %1505 = vrot.lane.b32.xlu0 %v1502, 1
      %v1506 = vpop.permute.xlu0 %1505
      %v1507 = vsel %vm1120, %v1504, %v1506
      %v1508 = vsel %vm1120, %v1506, %v1504
      %1509 = vrot.lane.b32.xlu0 %v1501, 127
      %v1510 = vpop.permute.xlu0 %1509
      %1511 = vrot.lane.b32.xlu0 %v1502, 127
      %v1512 = vpop.permute.xlu0 %1511
      %v1513 = vsel %vm1127, %v1510, %v1512
      %v1514 = vsel %vm1127, %v1512, %v1510
      %1516 = vset.pattern.permute.xlu0 0
      %1517 = vperm.xlu0 %1516, %v1487
      %v1518 = vpop.permute.xlu0 %1517
      %v1521 = vsel %vm1135, %v1486, 0
      %1523 = vmatprep.subr.mxu0 %v1507
      %1524 = vmatpush1.msra.mxu0 %v1508
      %1525 = vmatprep.subr.mxu0 %v1502
      %1526 = vmatpush1.msra.mxu0 %v1501
      %1527 = vmatprep.subr.mxu0 %v1514
      %1528 = vmatpush1.msra.mxu0 %v1513
      %1529 = vmatprep.subr.mxu0 0.0
      %1530 = vmatpush1.msra.mxu0 0.0
      %1531 = vmatprep.subr.mxu0 0.0
      %1532 = vmatpush1.msra.mxu0 0.0
      %1533 = vmatprep.subr.mxu0 0.0
      %1534 = vmatpush1.msra.mxu0 0.0
      %1535 = vmatprep.subr.mxu0 0.0
      %1536 = vmatpush1.msra.mxu0 0.0
      %1537 = vmatprep.subr.mxu0 0.0
      %1538 = vmatpush1.msra.mxu0 0.0
      %1539 = vmatprep.subr.mxu0 0.0
      %1540 = vmatpush1.msra.mxu0 0.0
      %1541 = vmatprep.subr.mxu0 0.0
      %1542 = vmatpush1.msra.mxu0 0.0
      %1543 = vmatprep.subr.mxu0 0.0
      %1544 = vmatpush1.msra.mxu0 0.0
      %1545 = vmatprep.subr.mxu0 0.0
      %1546 = vmatpush1.msra.mxu0 0.0
      %1547 = vmatprep.subr.mxu0 0.0
      %1548 = vmatpush1.msra.mxu0 0.0
      %1549 = vmatprep.subr.mxu0 0.0
      %1550 = vmatpush1.msra.mxu0 0.0
      %1551 = vmatprep.subr.mxu0 0.0
      %1552 = vmatpush1.msra.mxu0 0.0
      %1553 = vmatprep.subr.mxu0 0.0
      %1554 = vmatpush1.msra.mxu0 0.0
      %1555 = vmatprep.subr.mxu0 0.0
      %1556 = vmatpush1.msra.mxu0 0.0
      %1557 = vmatprep.subr.mxu0 0.0
      %1558 = vmatpush1.msra.mxu0 0.0
      %1559 = vmatprep.subr.mxu0 0.0
      %1560 = vmatpush1.msra.mxu0 0.0
      %1561 = vmatprep.subr.mxu0 0.0
      %1562 = vmatpush1.msra.mxu0 0.0
      %1563 = vmatprep.subr.mxu0 0.0
      %1564 = vmatpush1.msra.mxu0 0.0
      %1565 = vmatprep.subr.mxu0 0.0
      %1566 = vmatpush1.msra.mxu0 0.0
      %1567 = vmatprep.subr.mxu0 0.0
      %1568 = vmatpush1.msra.mxu0 0.0
      %1569 = vmatprep.subr.mxu0 0.0
      %1570 = vmatpush1.msra.mxu0 0.0
      %1571 = vmatprep.subr.mxu0 0.0
      %1572 = vmatpush1.msra.mxu0 0.0
      %1573 = vmatprep.subr.mxu0 0.0
      %1574 = vmatpush1.msra.mxu0 0.0
      %1575 = vmatprep.subr.mxu0 0.0
      %1576 = vmatpush1.msra.mxu0 0.0
      %1577 = vmatprep.subr.mxu0 0.0
      %1578 = vmatpush1.msra.mxu0 0.0
      %1579 = vmatprep.subr.mxu0 0.0
      %1580 = vmatpush1.msra.mxu0 0.0
      %1581 = vmatprep.subr.mxu0 0.0
      %1582 = vmatpush1.msra.mxu0 0.0
      %1583 = vmatprep.subr.mxu0 0.0
      %1584 = vmatpush1.msra.mxu0 0.0
      %1585 = vmatprep.subr.mxu0 0.0
      %1586 = vmatpush1.msra.mxu0 0.0
      %1587 = vmatprep.mubr.f32.mxu0 0.0
      %1588 = vmatmul.mubr.f32.gmra.mrb[0].mxu0 %v1521
      %v1589 = vpop.f32.mrb[0].mxu0
      %v1590 = vadd.f32 %v1518, %v1589
      %v1591 = vpop.f32.mrb[0].mxu0
      %v1592 = vadd.f32 %v1518, %v1591
      %1593 = vdwg.mxu0
      %vm1594 = vcmp.gt.f32.partialorder %v1590, 0.0
      %vm1595 = vcmp.gt.f32.partialorder %v1592, 0.0
      %v1596 = vmul.f32 %v1590, 0.1
      %v1597 = vmul.f32 %v1592, 0.1
      %v1598 = vsel %vm1594, %v1590, %v1596
      %v1599 = vsel %vm1595, %v1592, %v1597
      %v1600 = vadd.f32 %v1598, %v934
      %v1601 = vadd.f32 %v1599, %v936
      %v1602 = vmul.f32 %v1600, %v1494
      %v1603 = vmul.f32 %v1601, %v1498
      %1604 = vrot.lane.b32.xlu0 %v1602, 1
      %v1605 = vpop.permute.xlu0 %1604
      %1606 = vrot.lane.b32.xlu0 %v1603, 1
      %v1607 = vpop.permute.xlu0 %1606
      %v1608 = vsel %vm1120, %v1605, %v1607
      %v1609 = vsel %vm1120, %v1607, %v1605
      %1610 = vrot.lane.b32.xlu0 %v1602, 127
      %v1611 = vpop.permute.xlu0 %1610
      %1612 = vrot.lane.b32.xlu0 %v1603, 127
      %v1613 = vpop.permute.xlu0 %1612
      %v1614 = vsel %vm1127, %v1611, %v1613
      %v1615 = vsel %vm1127, %v1613, %v1611
      %1617 = vset.pattern.permute.xlu0 0
      %1618 = vperm.xlu0 %1617, %v1489
      %v1619 = vpop.permute.xlu0 %1618
      %v1622 = vsel %vm1135, %v1488, 0
      %1624 = vmatprep.subr.mxu0 %v1608
      %1625 = vmatpush1.msra.mxu0 %v1609
      %1626 = vmatprep.subr.mxu0 %v1603
      %1627 = vmatpush1.msra.mxu0 %v1602
      %1628 = vmatprep.subr.mxu0 %v1615
      %1629 = vmatpush1.msra.mxu0 %v1614
      %1630 = vmatprep.subr.mxu0 0.0
      %1631 = vmatpush1.msra.mxu0 0.0
      %1632 = vmatprep.subr.mxu0 0.0
      %1633 = vmatpush1.msra.mxu0 0.0
      %1634 = vmatprep.subr.mxu0 0.0
      %1635 = vmatpush1.msra.mxu0 0.0
      %1636 = vmatprep.subr.mxu0 0.0
      %1637 = vmatpush1.msra.mxu0 0.0
      %1638 = vmatprep.subr.mxu0 0.0
      %1639 = vmatpush1.msra.mxu0 0.0
      %1640 = vmatprep.subr.mxu0 0.0
      %1641 = vmatpush1.msra.mxu0 0.0
      %1642 = vmatprep.subr.mxu0 0.0
      %1643 = vmatpush1.msra.mxu0 0.0
      %1644 = vmatprep.subr.mxu0 0.0
      %1645 = vmatpush1.msra.mxu0 0.0
      %1646 = vmatprep.subr.mxu0 0.0
      %1647 = vmatpush1.msra.mxu0 0.0
      %1648 = vmatprep.subr.mxu0 0.0
      %1649 = vmatpush1.msra.mxu0 0.0
      %1650 = vmatprep.subr.mxu0 0.0
      %1651 = vmatpush1.msra.mxu0 0.0
      %1652 = vmatprep.subr.mxu0 0.0
      %1653 = vmatpush1.msra.mxu0 0.0
      %1654 = vmatprep.subr.mxu0 0.0
      %1655 = vmatpush1.msra.mxu0 0.0
      %1656 = vmatprep.subr.mxu0 0.0
      %1657 = vmatpush1.msra.mxu0 0.0
      %1658 = vmatprep.subr.mxu0 0.0
      %1659 = vmatpush1.msra.mxu0 0.0
      %1660 = vmatprep.subr.mxu0 0.0
      %1661 = vmatpush1.msra.mxu0 0.0
      %1662 = vmatprep.subr.mxu0 0.0
      %1663 = vmatpush1.msra.mxu0 0.0
      %1664 = vmatprep.subr.mxu0 0.0
      %1665 = vmatpush1.msra.mxu0 0.0
      %1666 = vmatprep.subr.mxu0 0.0
      %1667 = vmatpush1.msra.mxu0 0.0
      %1668 = vmatprep.subr.mxu0 0.0
      %1669 = vmatpush1.msra.mxu0 0.0
      %1670 = vmatprep.subr.mxu0 0.0
      %1671 = vmatpush1.msra.mxu0 0.0
      %1672 = vmatprep.subr.mxu0 0.0
      %1673 = vmatpush1.msra.mxu0 0.0
      %1674 = vmatprep.subr.mxu0 0.0
      %1675 = vmatpush1.msra.mxu0 0.0
      %1676 = vmatprep.subr.mxu0 0.0
      %1677 = vmatpush1.msra.mxu0 0.0
      %1678 = vmatprep.subr.mxu0 0.0
      %1679 = vmatpush1.msra.mxu0 0.0
      %1680 = vmatprep.subr.mxu0 0.0
      %1681 = vmatpush1.msra.mxu0 0.0
      %1682 = vmatprep.subr.mxu0 0.0
      %1683 = vmatpush1.msra.mxu0 0.0
      %1684 = vmatprep.subr.mxu0 0.0
      %1685 = vmatpush1.msra.mxu0 0.0
      %1686 = vmatprep.subr.mxu0 0.0
      %1687 = vmatpush1.msra.mxu0 0.0
      %1688 = vmatprep.mubr.f32.mxu0 0.0
      %1689 = vmatmul.mubr.f32.gmra.mrb[0].mxu0 %v1622
      %v1690 = vpop.f32.mrb[0].mxu0
      %v1691 = vadd.f32 %v1619, %v1690
      %v1692 = vpop.f32.mrb[0].mxu0
      %v1693 = vadd.f32 %v1619, %v1692
      %1694 = vdwg.mxu0
      %v1695 = vld [vmem:[%s16] sm:$0xff]
      %v1696 = vld [vmem:[%s16 + $0x8] sm:$0xff]
      %v1697 = vld [vmem:[%s17] sm:$0xff]
      %v1698 = vld [vmem:[%s17 + $0x8] sm:$0xff]
      %v1699 = vld [vmem:[%s18] sm:$0xff]
      %v1700 = vld [vmem:[%s19] sm:$0xff]
      %vm1701 = vcmp.gt.f32.partialorder %v1691, 0.0
      %vm1702 = vcmp.gt.f32.partialorder %v1693, 0.0
      %vm1703 = vcmp.gt.f32.partialorder %v1394, 0.0
      %vm1704 = vcmp.gt.f32.partialorder %v1481, 0.0
      %v1705 = vmul.f32 %v1691, 0.1
      %v1706 = vmul.f32 %v1693, 0.1
      %v1707 = vmul.f32 %v1394, 0.1
      %v1708 = vmul.f32 %v1481, 0.1
      %v1709 = vsel %vm1701, %v1691, %v1705
      %v1710 = vsel %vm1702, %v1693, %v1706
      %v1711 = vsel %vm1703, %v1394, %v1707
      %v1712 = vsel %vm1704, %v1481, %v1708
      %v1713 = vmul.f32 %v1709, %v1494
      %v1714 = vmul.f32 %v1710, %v1498
      %v1715 = vmul.f32 %v1711, %v1494
      %v1716 = vmul.f32 %v1712, %v1498
      %1717 = vrot.lane.b32.xlu0 %v1713, 1
      %v1718 = vpop.permute.xlu0 %1717
      %1719 = vrot.lane.b32.xlu0 %v1715, 1
      %v1720 = vpop.permute.xlu0 %1719
      %1721 = vrot.lane.b32.xlu0 %v1714, 1
      %v1722 = vpop.permute.xlu0 %1721
      %1723 = vrot.lane.b32.xlu0 %v1716, 1
      %v1724 = vpop.permute.xlu0 %1723
      %v1725 = vsel %vm1120, %v1718, %v1722
      %v1726 = vsel %vm1120, %v1720, %v1724
      %v1727 = vsel %vm1120, %v1722, %v1718
      %v1728 = vsel %vm1120, %v1724, %v1720
      %1729 = vrot.lane.b32.xlu0 %v1713, 127
      %v1730 = vpop.permute.xlu0 %1729
      %1731 = vrot.lane.b32.xlu0 %v1715, 127
      %v1732 = vpop.permute.xlu0 %1731
      %1733 = vrot.lane.b32.xlu0 %v1714, 127
      %v1734 = vpop.permute.xlu0 %1733
      %1735 = vrot.lane.b32.xlu0 %v1716, 127
      %v1736 = vpop.permute.xlu0 %1735
      %v1737 = vsel %vm1127, %v1730, %v1734
      %v1738 = vsel %vm1127, %v1732, %v1736
      %v1739 = vsel %vm1127, %v1734, %v1730
      %v1740 = vsel %vm1127, %v1736, %v1732
      %1742 = vset.pattern.permute.xlu0 0
      %1743 = vperm.xlu0 %1742, %v1697
      %v1744 = vpop.permute.xlu0 %1743
      %1747 = vset.pattern.permute.xlu0 0
      %1748 = vperm.xlu0 %1747, %v1698
      %v1749 = vpop.permute.xlu0 %1748
      %vm1751 = vcmask 392192
      %v1753 = vsel %vm1751, %v1695, 0
      %v1756 = vsel %vm1751, %v1696, 0
      %1758 = vmatprep.subr.mxu0 %v1725
      %1759 = vmatpush1.msra.mxu0 %v1727
      %1760 = vmatprep.subr.mxu0 %v1726
      %1761 = vmatpush1.msra.mxu0 %v1728
      %1762 = vmatprep.subr.mxu0 %v1714
      %1763 = vmatpush1.msra.mxu0 %v1713
      %1764 = vmatprep.subr.mxu0 %v1716
      %1765 = vmatpush1.msra.mxu0 %v1715
      %1766 = vmatprep.subr.mxu0 %v1739
      %1767 = vmatpush1.msra.mxu0 %v1737
      %1768 = vmatprep.subr.mxu0 %v1740
      %1769 = vmatpush1.msra.mxu0 %v1738
      %1770 = vmatprep.subr.mxu0 0.0
      %1771 = vmatpush1.msra.mxu0 0.0
      %1772 = vmatprep.subr.mxu0 0.0
      %1773 = vmatpush1.msra.mxu0 0.0
      %1774 = vmatprep.subr.mxu0 0.0
      %1775 = vmatpush1.msra.mxu0 0.0
      %1776 = vmatprep.subr.mxu0 0.0
      %1777 = vmatpush1.msra.mxu0 0.0
      %1778 = vmatprep.subr.mxu0 0.0
      %1779 = vmatpush1.msra.mxu0 0.0
      %1780 = vmatprep.subr.mxu0 0.0
      %1781 = vmatpush1.msra.mxu0 0.0
      %1782 = vmatprep.subr.mxu0 0.0
      %1783 = vmatpush1.msra.mxu0 0.0
      %1784 = vmatprep.subr.mxu0 0.0
      %1785 = vmatpush1.msra.mxu0 0.0
      %1786 = vmatprep.subr.mxu0 0.0
      %1787 = vmatpush1.msra.mxu0 0.0
      %1788 = vmatprep.subr.mxu0 0.0
      %1789 = vmatpush1.msra.mxu0 0.0
      %1790 = vmatprep.subr.mxu0 0.0
      %1791 = vmatpush1.msra.mxu0 0.0
      %1792 = vmatprep.subr.mxu0 0.0
      %1793 = vmatpush1.msra.mxu0 0.0
      %1794 = vmatprep.subr.mxu0 0.0
      %1795 = vmatpush1.msra.mxu0 0.0
      %1796 = vmatprep.subr.mxu0 0.0
      %1797 = vmatpush1.msra.mxu0 0.0
      %1798 = vmatprep.subr.mxu0 0.0
      %1799 = vmatpush1.msra.mxu0 0.0
      %1800 = vmatprep.subr.mxu0 0.0
      %1801 = vmatpush1.msra.mxu0 0.0
      %1802 = vmatprep.subr.mxu0 0.0
      %1803 = vmatpush1.msra.mxu0 0.0
      %1804 = vmatprep.subr.mxu0 0.0
      %1805 = vmatpush1.msra.mxu0 0.0
      %1806 = vmatprep.subr.mxu0 0.0
      %1807 = vmatpush1.msra.mxu0 0.0
      %1808 = vmatprep.subr.mxu0 0.0
      %1809 = vmatpush1.msra.mxu0 0.0
      %1810 = vmatprep.subr.mxu0 0.0
      %1811 = vmatpush1.msra.mxu0 0.0
      %1812 = vmatprep.subr.mxu0 0.0
      %1813 = vmatpush1.msra.mxu0 0.0
      %1814 = vmatprep.subr.mxu0 0.0
      %1815 = vmatpush1.msra.mxu0 0.0
      %1816 = vmatprep.subr.mxu0 0.0
      %1817 = vmatpush1.msra.mxu0 0.0
      %1818 = vmatprep.subr.mxu0 0.0
      %1819 = vmatpush1.msra.mxu0 0.0
      %1820 = vmatprep.subr.mxu0 0.0
      %1821 = vmatpush1.msra.mxu0 0.0
      %1822 = vmatprep.mubr.f32.mxu0 0.0
      %1823 = vmatmul.mubr.f32.gmra.mrb[0].mxu0 %v1753
      %v1824 = vpop.f32.mrb[0].mxu0
      %v1825 = vadd.f32 %v1744, %v1824
      %v1826 = vpop.f32.mrb[0].mxu0
      %v1827 = vadd.f32 %v1744, %v1826
      %1828 = vmatprep.mubr.f32.mxu0 0.0
      %1829 = vmatmul.mubr.f32.gmra.mrb[0].mxu0 %v1756
      %v1830 = vpop.f32.mrb[0].mxu0
      %v1831 = vadd.f32 %v1749, %v1830
      %v1832 = vpop.f32.mrb[0].mxu0
      %v1833 = vadd.f32 %v1749, %v1832
      %1834 = vdwg.mxu0
      %vm1835 = vcmp.gt.f32.partialorder %v1825, 0.0
      %vm1836 = vcmp.gt.f32.partialorder %v1827, 0.0
      %vm1837 = vcmp.gt.f32.partialorder %v1831, 0.0
      %vm1838 = vcmp.gt.f32.partialorder %v1833, 0.0
      %v1839 = vmul.f32 %v1825, 0.1
      %v1840 = vmul.f32 %v1827, 0.1
      %v1841 = vmul.f32 %v1831, 0.1
      %v1842 = vmul.f32 %v1833, 0.1
      %v1843 = vsel %vm1835, %v1825, %v1839
      %v1844 = vsel %vm1836, %v1827, %v1840
      %v1845 = vsel %vm1837, %v1831, %v1841
      %v1846 = vsel %vm1838, %v1833, %v1842
      %v1847 = vadd.f32 %v1843, %v1011
      %v1848 = vadd.f32 %v1844, %v1013
      %v1849 = vadd.f32 %v1845, %v1017
      %v1850 = vadd.f32 %v1846, %v1019
      %v1851 = vmul.f32 %v1847, %v1494
      %v1852 = vmul.f32 %v1848, %v1498
      %v1853 = vmul.f32 %v1849, %v1494
      %v1854 = vmul.f32 %v1850, %v1498
      %1855 = vrot.lane.b32.xlu0 %v1851, 1
      %v1856 = vpop.permute.xlu0 %1855
      %1857 = vrot.lane.b32.xlu0 %v1853, 1
      %v1858 = vpop.permute.xlu0 %1857
      %1859 = vrot.lane.b32.xlu0 %v1852, 1
      %v1860 = vpop.permute.xlu0 %1859
      %1861 = vrot.lane.b32.xlu0 %v1854, 1
      %v1862 = vpop.permute.xlu0 %1861
      %v1863 = vsel %vm1120, %v1856, %v1860
      %v1864 = vsel %vm1120, %v1858, %v1862
      %v1865 = vsel %vm1120, %v1860, %v1856
      %v1866 = vsel %vm1120, %v1862, %v1858
      %1867 = vrot.lane.b32.xlu0 %v1851, 127
      %v1868 = vpop.permute.xlu0 %1867
      %1869 = vrot.lane.b32.xlu0 %v1853, 127
      %v1870 = vpop.permute.xlu0 %1869
      %1871 = vrot.lane.b32.xlu0 %v1852, 127
      %v1872 = vpop.permute.xlu0 %1871
      %1873 = vrot.lane.b32.xlu0 %v1854, 127
      %v1874 = vpop.permute.xlu0 %1873
      %v1875 = vsel %vm1127, %v1868, %v1872
      %v1876 = vsel %vm1127, %v1870, %v1874
      %v1877 = vsel %vm1127, %v1872, %v1868
      %v1878 = vsel %vm1127, %v1874, %v1870
      %1880 = vset.pattern.permute.xlu0 0
      %1881 = vperm.xlu0 %1880, %v1700
      %v1882 = vpop.permute.xlu0 %1881
      %v1885 = vsel %vm1751, %v1699, 0
      %1887 = vmatprep.subr.mxu0 %v1863
      %1888 = vmatpush1.msra.mxu0 %v1865
      %1889 = vmatprep.subr.mxu0 %v1864
      %1890 = vmatpush1.msra.mxu0 %v1866
      %1891 = vmatprep.subr.mxu0 %v1852
      %1892 = vmatpush1.msra.mxu0 %v1851
      %1893 = vmatprep.subr.mxu0 %v1854
      %1894 = vmatpush1.msra.mxu0 %v1853
      %1895 = vmatprep.subr.mxu0 %v1877
      %1896 = vmatpush1.msra.mxu0 %v1875
      %1897 = vmatprep.subr.mxu0 %v1878
      %1898 = vmatpush1.msra.mxu0 %v1876
      %1899 = vmatprep.subr.mxu0 0.0
      %1900 = vmatpush1.msra.mxu0 0.0
      %1901 = vmatprep.subr.mxu0 0.0
      %1902 = vmatpush1.msra.mxu0 0.0
      %1903 = vmatprep.subr.mxu0 0.0
      %1904 = vmatpush1.msra.mxu0 0.0
      %1905 = vmatprep.subr.mxu0 0.0
      %1906 = vmatpush1.msra.mxu0 0.0
      %1907 = vmatprep.subr.mxu0 0.0
      %1908 = vmatpush1.msra.mxu0 0.0
      %1909 = vmatprep.subr.mxu0 0.0
      %1910 = vmatpush1.msra.mxu0 0.0
      %1911 = vmatprep.subr.mxu0 0.0
      %1912 = vmatpush1.msra.mxu0 0.0
      %1913 = vmatprep.subr.mxu0 0.0
      %1914 = vmatpush1.msra.mxu0 0.0
      %1915 = vmatprep.subr.mxu0 0.0
      %1916 = vmatpush1.msra.mxu0 0.0
      %1917 = vmatprep.subr.mxu0 0.0
      %1918 = vmatpush1.msra.mxu0 0.0
      %1919 = vmatprep.subr.mxu0 0.0
      %1920 = vmatpush1.msra.mxu0 0.0
      %1921 = vmatprep.subr.mxu0 0.0
      %1922 = vmatpush1.msra.mxu0 0.0
      %1923 = vmatprep.subr.mxu0 0.0
      %1924 = vmatpush1.msra.mxu0 0.0
      %1925 = vmatprep.subr.mxu0 0.0
      %1926 = vmatpush1.msra.mxu0 0.0
      %1927 = vmatprep.subr.mxu0 0.0
      %1928 = vmatpush1.msra.mxu0 0.0
      %1929 = vmatprep.subr.mxu0 0.0
      %1930 = vmatpush1.msra.mxu0 0.0
      %1931 = vmatprep.subr.mxu0 0.0
      %1932 = vmatpush1.msra.mxu0 0.0
      %1933 = vmatprep.subr.mxu0 0.0
      %1934 = vmatpush1.msra.mxu0 0.0
      %1935 = vmatprep.subr.mxu0 0.0
      %1936 = vmatpush1.msra.mxu0 0.0
      %1937 = vmatprep.subr.mxu0 0.0
      %1938 = vmatpush1.msra.mxu0 0.0
      %1939 = vmatprep.subr.mxu0 0.0
      %1940 = vmatpush1.msra.mxu0 0.0
      %1941 = vmatprep.subr.mxu0 0.0
      %1942 = vmatpush1.msra.mxu0 0.0
      %1943 = vmatprep.subr.mxu0 0.0
      %1944 = vmatpush1.msra.mxu0 0.0
      %1945 = vmatprep.subr.mxu0 0.0
      %1946 = vmatpush1.msra.mxu0 0.0
      %1947 = vmatprep.subr.mxu0 0.0
      %1948 = vmatpush1.msra.mxu0 0.0
      %1949 = vmatprep.subr.mxu0 0.0
      %1950 = vmatpush1.msra.mxu0 0.0
      %1951 = vmatprep.mubr.f32.mxu0 0.0
      %1952 = vmatmul.mubr.f32.gmra.mrb[0].mxu0 %v1885
      %v1953 = vpop.f32.mrb[0].mxu0
      %v1954 = vadd.f32 %v1882, %v1953
      %v1955 = vpop.f32.mrb[0].mxu0
      %v1956 = vadd.f32 %v1882, %v1955
      %1957 = vdwg.mxu0
      %v1958 = vld [vmem:[%s20] sm:$0xff]
      %v1959 = vld [vmem:[%s21] sm:$0xff]
      %v1960 = vld [vmem:[%s22] sm:$0x7]
      %v1961 = vld [vmem:[%s23] sm:$0x7]
      %vm1962 = vcmp.gt.f32.partialorder %v1954, 0.0
      %vm1963 = vcmp.gt.f32.partialorder %v1956, 0.0
      %v1964 = vmul.f32 %v1954, 0.1
      %v1965 = vmul.f32 %v1956, 0.1
      %v1966 = vsel %vm1962, %v1954, %v1964
      %v1967 = vsel %vm1963, %v1956, %v1965
      %v1968 = vmul.f32 %v1966, %v1494
      %v1969 = vmul.f32 %v1967, %v1498
      %1970 = vrot.lane.b32.xlu0 %v1968, 1
      %v1971 = vpop.permute.xlu0 %1970
      %1972 = vrot.lane.b32.xlu0 %v1969, 1
      %v1973 = vpop.permute.xlu0 %1972
      %v1974 = vsel %vm1120, %v1971, %v1973
      %v1975 = vsel %vm1120, %v1973, %v1971
      %1976 = vrot.lane.b32.xlu0 %v1968, 127
      %v1977 = vpop.permute.xlu0 %1976
      %1978 = vrot.lane.b32.xlu0 %v1969, 127
      %v1979 = vpop.permute.xlu0 %1978
      %v1980 = vsel %vm1127, %v1977, %v1979
      %v1981 = vsel %vm1127, %v1979, %v1977
      %1983 = vset.pattern.permute.xlu0 0
      %1984 = vperm.xlu0 %1983, %v1959
      %v1985 = vpop.permute.xlu0 %1984
      %v1988 = vsel %vm1135, %v1958, 0
      %1990 = vmatprep.subr.mxu0 %v1974
      %1991 = vmatpush1.msra.mxu0 %v1975
      %1992 = vmatprep.subr.mxu0 %v1969
      %1993 = vmatpush1.msra.mxu0 %v1968
      %1994 = vmatprep.subr.mxu0 %v1981
      %1995 = vmatpush1.msra.mxu0 %v1980
      %1996 = vmatprep.subr.mxu0 0.0
      %1997 = vmatpush1.msra.mxu0 0.0
      %1998 = vmatprep.subr.mxu0 0.0
      %1999 = vmatpush1.msra.mxu0 0.0
      %2000 = vmatprep.subr.mxu0 0.0
      %2001 = vmatpush1.msra.mxu0 0.0
      %2002 = vmatprep.subr.mxu0 0.0
      %2003 = vmatpush1.msra.mxu0 0.0
      %2004 = vmatprep.subr.mxu0 0.0
      %2005 = vmatpush1.msra.mxu0 0.0
      %2006 = vmatprep.subr.mxu0 0.0
      %2007 = vmatpush1.msra.mxu0 0.0
      %2008 = vmatprep.subr.mxu0 0.0
      %2009 = vmatpush1.msra.mxu0 0.0
      %2010 = vmatprep.subr.mxu0 0.0
      %2011 = vmatpush1.msra.mxu0 0.0
      %2012 = vmatprep.subr.mxu0 0.0
      %2013 = vmatpush1.msra.mxu0 0.0
      %2014 = vmatprep.subr.mxu0 0.0
      %2015 = vmatpush1.msra.mxu0 0.0
      %2016 = vmatprep.subr.mxu0 0.0
      %2017 = vmatpush1.msra.mxu0 0.0
      %2018 = vmatprep.subr.mxu0 0.0
      %2019 = vmatpush1.msra.mxu0 0.0
      %2020 = vmatprep.subr.mxu0 0.0
      %2021 = vmatpush1.msra.mxu0 0.0
      %2022 = vmatprep.subr.mxu0 0.0
      %2023 = vmatpush1.msra.mxu0 0.0
      %2024 = vmatprep.subr.mxu0 0.0
      %2025 = vmatpush1.msra.mxu0 0.0
      %2026 = vmatprep.subr.mxu0 0.0
      %2027 = vmatpush1.msra.mxu0 0.0
      %2028 = vmatprep.subr.mxu0 0.0
      %2029 = vmatpush1.msra.mxu0 0.0
      %2030 = vmatprep.subr.mxu0 0.0
      %2031 = vmatpush1.msra.mxu0 0.0
      %2032 = vmatprep.subr.mxu0 0.0
      %2033 = vmatpush1.msra.mxu0 0.0
      %2034 = vmatprep.subr.mxu0 0.0
      %2035 = vmatpush1.msra.mxu0 0.0
      %2036 = vmatprep.subr.mxu0 0.0
      %2037 = vmatpush1.msra.mxu0 0.0
      %2038 = vmatprep.subr.mxu0 0.0
      %2039 = vmatpush1.msra.mxu0 0.0
      %2040 = vmatprep.subr.mxu0 0.0
      %2041 = vmatpush1.msra.mxu0 0.0
      %2042 = vmatprep.subr.mxu0 0.0
      %2043 = vmatpush1.msra.mxu0 0.0
      %2044 = vmatprep.subr.mxu0 0.0
      %2045 = vmatpush1.msra.mxu0 0.0
      %2046 = vmatprep.subr.mxu0 0.0
      %2047 = vmatpush1.msra.mxu0 0.0
      %2048 = vmatprep.subr.mxu0 0.0
      %2049 = vmatpush1.msra.mxu0 0.0
      %2050 = vmatprep.subr.mxu0 0.0
      %2051 = vmatpush1.msra.mxu0 0.0
      %2052 = vmatprep.subr.mxu0 0.0
      %2053 = vmatpush1.msra.mxu0 0.0
      %2054 = vmatprep.mubr.f32.mxu0 0.0
      %2055 = vmatmul.mubr.f32.gmra.mrb[0].mxu0 %v1988
      %v2056 = vpop.f32.mrb[0].mxu0
      %v2057 = vadd.f32 %v1985, %v2056
      %v2058 = vpop.f32.mrb[0].mxu0
      %v2059 = vadd.f32 %v1985, %v2058
      %2060 = vdwg.mxu0
      %vm2061 = vcmp.gt.f32.partialorder %v2057, 0.0
      %vm2062 = vcmp.gt.f32.partialorder %v2059, 0.0
      %v2063 = vmul.f32 %v2057, 0.1
      %v2064 = vmul.f32 %v2059, 0.1
      %v2065 = vsel %vm2061, %v2057, %v2063
      %v2066 = vsel %vm2062, %v2059, %v2064
      %v2067 = vadd.f32 %v2065, %v1091
      %v2068 = vadd.f32 %v2066, %v1093
      %v2069 = vmul.f32 %v2067, %v1494
      %v2070 = vmul.f32 %v2068, %v1498
      %2071 = vrot.lane.b32.xlu0 %v2069, 1
      %v2072 = vpop.permute.xlu0 %2071
      %2073 = vrot.lane.b32.xlu0 %v2070, 1
      %v2074 = vpop.permute.xlu0 %2073
      %v2075 = vsel %vm1120, %v2072, %v2074
      %v2076 = vsel %vm1120, %v2074, %v2072
      %2077 = vrot.lane.b32.xlu0 %v2069, 127
      %v2078 = vpop.permute.xlu0 %2077
      %2079 = vrot.lane.b32.xlu0 %v2070, 127
      %v2080 = vpop.permute.xlu0 %2079
      %v2081 = vsel %vm1127, %v2078, %v2080
      %v2082 = vsel %vm1127, %v2080, %v2078
      %2084 = vset.pattern.permute.xlu0 0
      %2085 = vperm.xlu0 %2084, %v1961
      %v2086 = vpop.permute.xlu0 %2085
      %v2089 = vsel %vm1135, %v1960, 0
      %2091 = vmatprep.subr.mxu0 %v2075
      %2092 = vmatpush1.msra.mxu0 %v2076
      %2093 = vmatprep.subr.mxu0 %v2070
      %2094 = vmatpush1.msra.mxu0 %v2069
      %2095 = vmatprep.subr.mxu0 %v2082
      %2096 = vmatpush1.msra.mxu0 %v2081
      %2097 = vmatprep.subr.mxu0 0.0
      %2098 = vmatpush1.msra.mxu0 0.0
      %2099 = vmatprep.subr.mxu0 0.0
      %2100 = vmatpush1.msra.mxu0 0.0
      %2101 = vmatprep.subr.mxu0 0.0
      %2102 = vmatpush1.msra.mxu0 0.0
      %2103 = vmatprep.subr.mxu0 0.0
      %2104 = vmatpush1.msra.mxu0 0.0
      %2105 = vmatprep.subr.mxu0 0.0
      %2106 = vmatpush1.msra.mxu0 0.0
      %2107 = vmatprep.subr.mxu0 0.0
      %2108 = vmatpush1.msra.mxu0 0.0
      %2109 = vmatprep.subr.mxu0 0.0
      %2110 = vmatpush1.msra.mxu0 0.0
      %2111 = vmatprep.subr.mxu0 0.0
      %2112 = vmatpush1.msra.mxu0 0.0
      %2113 = vmatprep.subr.mxu0 0.0
      %2114 = vmatpush1.msra.mxu0 0.0
      %2115 = vmatprep.subr.mxu0 0.0
      %2116 = vmatpush1.msra.mxu0 0.0
      %2117 = vmatprep.subr.mxu0 0.0
      %2118 = vmatpush1.msra.mxu0 0.0
      %2119 = vmatprep.subr.mxu0 0.0
      %2120 = vmatpush1.msra.mxu0 0.0
      %2121 = vmatprep.subr.mxu0 0.0
      %2122 = vmatpush1.msra.mxu0 0.0
      %2123 = vmatprep.subr.mxu0 0.0
      %2124 = vmatpush1.msra.mxu0 0.0
      %2125 = vmatprep.subr.mxu0 0.0
      %2126 = vmatpush1.msra.mxu0 0.0
      %2127 = vmatprep.subr.mxu0 0.0
      %2128 = vmatpush1.msra.mxu0 0.0
      %2129 = vmatprep.subr.mxu0 0.0
      %2130 = vmatpush1.msra.mxu0 0.0
      %2131 = vmatprep.subr.mxu0 0.0
      %2132 = vmatpush1.msra.mxu0 0.0
      %2133 = vmatprep.subr.mxu0 0.0
      %2134 = vmatpush1.msra.mxu0 0.0
      %2135 = vmatprep.subr.mxu0 0.0
      %2136 = vmatpush1.msra.mxu0 0.0
      %2137 = vmatprep.subr.mxu0 0.0
      %2138 = vmatpush1.msra.mxu0 0.0
      %2139 = vmatprep.subr.mxu0 0.0
      %2140 = vmatpush1.msra.mxu0 0.0
      %2141 = vmatprep.subr.mxu0 0.0
      %2142 = vmatpush1.msra.mxu0 0.0
      %2143 = vmatprep.subr.mxu0 0.0
      %2144 = vmatpush1.msra.mxu0 0.0
      %2145 = vmatprep.subr.mxu0 0.0
      %2146 = vmatpush1.msra.mxu0 0.0
      %2147 = vmatprep.subr.mxu0 0.0
      %2148 = vmatpush1.msra.mxu0 0.0
      %2149 = vmatprep.subr.mxu0 0.0
      %2150 = vmatpush1.msra.mxu0 0.0
      %2151 = vmatprep.subr.mxu0 0.0
      %2152 = vmatpush1.msra.mxu0 0.0
      %2153 = vmatprep.subr.mxu0 0.0
      %2154 = vmatpush1.msra.mxu0 0.0
      %2155 = vmatprep.mubr.f32.mxu0 0.0
      %2156 = vmatmul.mubr.f32.gmra.mrb[0].mxu0 %v2089
      %v2157 = vpop.f32.mrb[0].mxu0
      %v2158 = vadd.f32 %v2086, %v2157
      %v2159 = vpop.f32.mrb[0].mxu0
      %v2160 = vadd.f32 %v2086, %v2159
      %2161 = vdwg.mxu0
      %v2164 = vcombine.low %v2158, %v2160
      %2166 = vst [vmem:[%s777] sm:$0x77] %v2164
      %p2167 = scmp.lt.s32.totalorder %s35, 1
      %s2168 = scalar_select %p2167, %s35, 1
      %s2169 = smul.addr %s2168, 2
      %s2170 = smul.addr %s2169, 4
      %s2171 = scalar_lea.vmem %s24, %s2170
      // Predicated region
      $region117: #{sci_mr_res_forward.1} parent=115 // pred_check
        %p2172 = pneg %p572
      $region118: #{sci_mr_res_forward.1} parent=115 // pred_check_branch
        %2174 = sbr.rel (%p2172) target = $region120
      $region119: #{sci_mr_res_forward.1} parent=115 // pred_region
        _
      $region120: #{sci_mr_res_forward.1} parent=115 // pred_fallthru
        _
    $region116: #{sci_mr_res_forward.1} parent=5 // pred_fallthru
      _
    %p2175 = scmp.le.s32.totalorder 2, %s30
    // Predicated region
    $region121: #{sci_mr_res_forward.1} parent=5 // pred_check
      %p2176 = pneg %p2175
    $region122: #{sci_mr_res_forward.1} parent=5 // pred_check_branch
      %2178 = sbr.rel (%p2176) target = $region124
    $region123: #{sci_mr_res_forward.1} parent=5 // pred_region
      %s2179 = ssub.s32 %s30, 2
      // Predicated region
      $region125: #{sci_mr_res_forward.1} parent=123 // pred_check
        %p2180 = pneg %p578
      $region126: #{sci_mr_res_forward.1} parent=123 // pred_check_branch
        %2182 = sbr.rel (%p2180) target = $region128
      $region127: #{sci_mr_res_forward.1} parent=123 // pred_region
        %p2183 = scmp.lt.s32.totalorder %s36, 1
        %s2184 = scalar_select %p2183, %s36, 1
        %s2185 = smul.addr %s2184, 2
        %s2186 = smul.addr %s2185, 4
        %s2187 = scalar_lea.vmem %s24, %s2186
      $region128: #{sci_mr_res_forward.1} parent=123 // pred_fallthru
        _
    $region124: #{sci_mr_res_forward.1} parent=5 // pred_fallthru
      _
  $region6: #{sci_mr_res_forward.1} parent=0 // loop_footer
    %s34 = sadd.s32 1, %s30
  $region7: #{sci_mr_res_forward.1} parent=0 // loop_footer_branch
    %29 = sbr.rel target = $region3
  $region8: #{sci_mr_res_forward.1} parent=0 // loop_exit
    _

</llo_original>
